<compile_context>
chip_gen: v7x
topology: tpu7x:2x2x1
jax: 0.10.0
libtpu: 0.0.40
codegen_flags: <defaults>
</compile_context>

<pallas_src>
import functools

import jax
import jax.numpy as jnp
import numpy as np
from jax.experimental import pallas as pl
from jax.experimental.pallas import tpu as pltpu


def _layernorm(x, g, b, eps=1e-5):
    mu = jnp.mean(x, axis=-1, keepdims=True)
    var = jnp.mean((x - mu) ** 2, axis=-1, keepdims=True)
    return (x - mu) * jax.lax.rsqrt(var + eps) * g + b


def residual_attention_block_kernel(
    x_ref,                       # (Bt, L, D)   input block (batch-major)
    ln1g_ref, ln1b_ref,          # (1, D) f32
    wqkv_ref, bqkv_ref,          # (D, 3D) bf16, (1, 3D) f32
    wo_ref, bo_ref,              # (D, D) bf16, (1, D) f32
    ln2g_ref, ln2b_ref,          # (1, D) f32
    wfc_ref, bfc_ref,            # (D, 4D) bf16, (1, 4D) f32
    wpj_ref, bpj_ref,            # (4D, D) bf16, (1, D) f32
    o_ref,                       # (Bt, L, D)
    *, n_head: int,
):
    Bt, L, D = x_ref.shape
    hd = D // n_head
    rows = Bt * L
    scale = 1.0 / float(np.sqrt(hd))

    # rows are ordered (batch, seq) -> attention never mixes batch elements.
    x = x_ref[...].astype(jnp.float32).reshape(rows, D)

    # ---------------- ln_1 (fp32, matching the torch LayerNorm subclass) ----
    xn = _layernorm(x, ln1g_ref[...], ln1b_ref[...])

    # ---------------- fused QKV projection (bf16 MXU, f32 accumulate) -------
    qkv = jnp.dot(xn.astype(jnp.bfloat16), wqkv_ref[...],
                  preferred_element_type=jnp.float32) + bqkv_ref[...]

    # ---------------- multi-head self attention ------------------------------
    # Head merge is folded into the output projection: attn += pv_h @ Wo[h].
    wo = wo_ref[...]                                       # (D, D) bf16
    attn = jnp.zeros((rows, D), jnp.float32)
    for h in range(n_head):                                # static unroll over heads
        sl_q = slice(h * hd, (h + 1) * hd)
        sl_k = slice(D + h * hd, D + (h + 1) * hd)
        sl_v = slice(2 * D + h * hd, 2 * D + (h + 1) * hd)
        qh = (qkv[:, sl_q] * scale).astype(jnp.bfloat16).reshape(Bt, L, hd)
        kh = qkv[:, sl_k].astype(jnp.bfloat16).reshape(Bt, L, hd)
        vh = qkv[:, sl_v].astype(jnp.bfloat16).reshape(Bt, L, hd)

        # Batched over Bt (single leading batch dim): (Bt, L, L)
        s = jnp.einsum('bqd,bkd->bqk', qh, kh,
                       preferred_element_type=jnp.float32)
        s = s - jnp.max(s, axis=-1, keepdims=True)
        e = jnp.exp(s)
        inv = pl.reciprocal(jnp.sum(e, axis=-1, keepdims=True), approx=True)
        p = (e * inv).astype(jnp.bfloat16)

        pv = jnp.einsum('bqk,bkd->bqd', p, vh,
                        preferred_element_type=jnp.float32)       # (Bt, L, hd)
        attn = attn + jnp.dot(pv.reshape(rows, hd).astype(jnp.bfloat16),
                              wo[sl_q, :],
                              preferred_element_type=jnp.float32)
    attn = attn + bo_ref[...]

    x = x + attn                                                   # residual 1

    # ---------------- ln_2 + MLP (c_fc -> QuickGELU -> c_proj) --------------
    xn2 = _layernorm(x, ln2g_ref[...], ln2b_ref[...])
    hidden = jnp.dot(xn2.astype(jnp.bfloat16), wfc_ref[...],
                     preferred_element_type=jnp.float32) + bfc_ref[...]
    hidden = hidden * (1.0 / (1.0 + jnp.exp(-1.702 * hidden)))     # QuickGELU
    mlp = jnp.dot(hidden.astype(jnp.bfloat16), wpj_ref[...],
                  preferred_element_type=jnp.float32) + bpj_ref[...]

    o_ref[...] = (x + mlp).reshape(Bt, L, D).astype(o_ref.dtype)   # residual 2


def _pick_block_batch(n, seq_len, target_rows=512):
    """Largest divisor of n with ~target_rows rows per grid step."""
    bt = max(1, min(n, max(1, target_rows // max(seq_len, 1))))
    while n % bt != 0:
        bt -= 1
    return bt


def residual_attention_block_nld(x_nld, params, n_head, block_batch=None):
    """x_nld: (N, L, D). Projection weights in `params` are pre-transposed
    to (in_features, out_features)."""
    N, L, D = x_nld.shape
    (ln1g, ln1b, wqkv_t, bqkv, wo_t, bo,
     ln2g, ln2b, wfc_t, bfc, wpj_t, bpj) = params

    # bf16 weights: half the resident weight VMEM; matmuls accumulate in f32.
    kparams = (ln1g, ln1b,
               wqkv_t.astype(jnp.bfloat16), bqkv,
               wo_t.astype(jnp.bfloat16), bo,
               ln2g, ln2b,
               wfc_t.astype(jnp.bfloat16), bfc,
               wpj_t.astype(jnp.bfloat16), bpj)

    bt = block_batch if block_batch is not None else _pick_block_batch(N, L)
    assert N % bt == 0, "block_batch must divide the batch size"
    grid = (N // bt,)

    # Constant index maps -> weight blocks stay resident across all grid steps.
    def const_spec(p):
        return pl.BlockSpec(p.shape, lambda n, _z=(0,) * p.ndim: _z)

    in_specs = [pl.BlockSpec((bt, L, D), lambda n: (n, 0, 0))]
    in_specs += [const_spec(p) for p in kparams]

    # Advisory cost estimate so XLA schedules around this call sensibly.
    flops = int(24 * N * L * D * D + 4 * N * L * L * D)
    transcend = int(N * n_head * L * L + 4 * N * L * D)
    bytes_acc = int(2 * N * L * D * np.dtype(x_nld.dtype).itemsize
                    + 12 * D * D * 2)

    return pl.pallas_call(
        functools.partial(residual_attention_block_kernel, n_head=n_head),
        out_shape=jax.ShapeDtypeStruct((N, L, D), x_nld.dtype),
        grid=grid,
        in_specs=in_specs,
        out_specs=pl.BlockSpec((bt, L, D), lambda n: (n, 0, 0)),
        compiler_params=pltpu.CompilerParams(
            dimension_semantics=("parallel",),
            vmem_limit_bytes=64 * 1024 * 1024),
        cost_estimate=pl.CostEstimate(
            flops=flops, transcendentals=transcend, bytes_accessed=bytes_acc),
    )(x_nld, *kparams)


def residual_attention_block(x_lnd, params, n_head, block_batch=None):
    """Torch-layout adapter: x_lnd (L, N, D) as in nn.MultiheadAttention.
    Callers that already hold (N, L, D) should use residual_attention_block_nld
    directly and avoid these two transposes."""
    out = residual_attention_block_nld(
        jnp.transpose(x_lnd, (1, 0, 2)), params, n_head, block_batch)
    return jnp.transpose(out, (1, 0, 2))


# TODO(synk): optional attn_mask (additive bias on the scores) is not
# implemented; the module's default attn_mask=None path is what this kernel covers.


def reference_block(x_lnd, params, n_head):
    """Pure-JAX f32 reference mirroring torch nn.MultiheadAttention semantics."""
    (ln1g, ln1b, wqkv_t, bqkv, wo_t, bo,
     ln2g, ln2b, wfc_t, bfc, wpj_t, bpj) = params
    x = x_lnd.astype(jnp.float32)
    L, N, D = x.shape
    hd = D // n_head
    eps = 1e-5

    def ln(z, g, b):
        mu = jnp.mean(z, -1, keepdims=True)
        var = jnp.mean((z - mu) ** 2, -1, keepdims=True)
        return (z - mu) / jnp.sqrt(var + eps) * g.reshape(-1) + b.reshape(-1)

    xn = ln(x, ln1g, ln1b)
    qkv = xn @ wqkv_t + bqkv.reshape(-1)
    q, k, v = qkv[..., :D], qkv[..., D:2 * D], qkv[..., 2 * D:]

    def heads(t):  # (L, N, D) -> (N, H, L, hd)
        return t.reshape(L, N, n_head, hd).transpose(1, 2, 0, 3)

    qh, kh, vh = heads(q), heads(k), heads(v)
    s = jnp.einsum('nhqd,nhkd->nhqk', qh / jnp.sqrt(float(hd)), kh)
    p = jax.nn.softmax(s, axis=-1)
    o = jnp.einsum('nhqk,nhkd->nhqd', p, vh)
    o = o.transpose(2, 0, 1, 3).reshape(L, N, D)
    x = x + (o @ wo_t + bo.reshape(-1))

    xn2 = ln(x, ln2g, ln2b)
    h = xn2 @ wfc_t + bfc.reshape(-1)
    h = h * (1.0 / (1.0 + jnp.exp(-1.702 * h)))
    return x + (h @ wpj_t + bpj.reshape(-1))


def make_params(key, d_model):
    D = d_model
    ks = jax.random.split(key, 6)
    scale = 0.02
    ln1g = jnp.ones((1, D), jnp.float32)
    ln1b = jnp.zeros((1, D), jnp.float32)
    wqkv_t = scale * jax.random.normal(ks[0], (D, 3 * D), jnp.float32)
    bqkv = scale * jax.random.normal(ks[1], (1, 3 * D), jnp.float32)
    wo_t = scale * jax.random.normal(ks[2], (D, D), jnp.float32)
    bo = jnp.zeros((1, D), jnp.float32)
    ln2g = jnp.ones((1, D), jnp.float32)
    ln2b = jnp.zeros((1, D), jnp.float32)
    wfc_t = scale * jax.random.normal(ks[3], (D, 4 * D), jnp.float32)
    bfc = scale * jax.random.normal(ks[4], (1, 4 * D), jnp.float32)
    wpj_t = scale * jax.random.normal(ks[5], (4 * D, D), jnp.float32)
    bpj = jnp.zeros((1, D), jnp.float32)
    return (ln1g, ln1b, wqkv_t, bqkv, wo_t, bo,
            ln2g, ln2b, wfc_t, bfc, wpj_t, bpj)


if __name__ == "__main__":
    L, N, D, H = 8, 2, 32, 4          # seq, batch, d_model, n_head
    key = jax.random.PRNGKey(0)
    kx, kp = jax.random.split(key)
    x = jax.random.normal(kx, (L, N, D), jnp.float32)
    params = make_params(kp, D)

    out = residual_attention_block(x, params, H)
    out = jax.block_until_ready(out)

    ref = reference_block(x, params, H)
    assert out.shape == (L, N, D) and out.dtype == jnp.float32
    # bf16 matmul operands (f32 accumulation) -> tolerance loosened vs f32 ref.
    np.testing.assert_allclose(np.asarray(out), np.asarray(ref),
                               rtol=2e-2, atol=2e-2)
    print("KERNEL_OK")
</pallas_src>

<mosaic_0001>
module attributes {stable_mosaic.version = 11 : i64} {
  func.func @residual_attention_block_kernel(%arg0: i32, %arg1: memref<2x8x32xf32, #tpu.memory_space<vmem>>, %arg2: memref<1x32xf32, #tpu.memory_space<vmem>>, %arg3: memref<1x32xf32, #tpu.memory_space<vmem>>, %arg4: memref<32x96xbf16, #tpu.memory_space<vmem>>, %arg5: memref<1x96xf32, #tpu.memory_space<vmem>>, %arg6: memref<32x32xbf16, #tpu.memory_space<vmem>>, %arg7: memref<1x32xf32, #tpu.memory_space<vmem>>, %arg8: memref<1x32xf32, #tpu.memory_space<vmem>>, %arg9: memref<1x32xf32, #tpu.memory_space<vmem>>, %arg10: memref<32x128xbf16, #tpu.memory_space<vmem>>, %arg11: memref<1x128xf32, #tpu.memory_space<vmem>>, %arg12: memref<128x32xbf16, #tpu.memory_space<vmem>>, %arg13: memref<1x32xf32, #tpu.memory_space<vmem>>, %arg14: memref<2x8x32xf32, #tpu.memory_space<vmem>>) attributes {dimension_semantics = [#tpu.dimension_semantics<parallel>], iteration_bounds = array<i64: 1>, scalar_prefetch = 0 : i64, scratch_operands = 0 : i64, tpu.core_type = #tpu.core_type<tc>, window_params = [{transform_indices = @transform_0, window_bounds = array<i64: 2, 8, 32>}, {pipeline_mode = #tpu.pipeline_mode<synchronous>, transform_indices = @transform_1, window_bounds = array<i64: 1, 32>}, {pipeline_mode = #tpu.pipeline_mode<synchronous>, transform_indices = @transform_2, window_bounds = array<i64: 1, 32>}, {pipeline_mode = #tpu.pipeline_mode<synchronous>, transform_indices = @transform_3, window_bounds = array<i64: 32, 96>}, {pipeline_mode = #tpu.pipeline_mode<synchronous>, transform_indices = @transform_4, window_bounds = array<i64: 1, 96>}, {pipeline_mode = #tpu.pipeline_mode<synchronous>, transform_indices = @transform_5, window_bounds = array<i64: 32, 32>}, {pipeline_mode = #tpu.pipeline_mode<synchronous>, transform_indices = @transform_6, window_bounds = array<i64: 1, 32>}, {pipeline_mode = #tpu.pipeline_mode<synchronous>, transform_indices = @transform_7, window_bounds = array<i64: 1, 32>}, {pipeline_mode = #tpu.pipeline_mode<synchronous>, transform_indices = @transform_8, window_bounds = array<i64: 1, 32>}, {pipeline_mode = #tpu.pipeline_mode<synchronous>, transform_indices = @transform_9, window_bounds = array<i64: 32, 128>}, {pipeline_mode = #tpu.pipeline_mode<synchronous>, transform_indices = @transform_10, window_bounds = array<i64: 1, 128>}, {pipeline_mode = #tpu.pipeline_mode<synchronous>, transform_indices = @transform_11, window_bounds = array<i64: 128, 32>}, {pipeline_mode = #tpu.pipeline_mode<synchronous>, transform_indices = @transform_12, window_bounds = array<i64: 1, 32>}, {transform_indices = @transform_13, window_bounds = array<i64: 2, 8, 32>}]} {
    %c0 = arith.constant 0 : index
    %c0_0 = arith.constant 0 : index
    %c0_1 = arith.constant 0 : index
    %0 = vector.load %arg1[%c0, %c0_0, %c0_1] : memref<2x8x32xf32, #tpu.memory_space<vmem>>, vector<2x8x32xf32>
    %1 = vector.shape_cast %0 : vector<2x8x32xf32> to vector<16x32xf32>
    %c0_2 = arith.constant 0 : index
    %c0_3 = arith.constant 0 : index
    %2 = vector.load %arg2[%c0_2, %c0_3] : memref<1x32xf32, #tpu.memory_space<vmem>>, vector<1x32xf32>
    %c0_4 = arith.constant 0 : index
    %c0_5 = arith.constant 0 : index
    %3 = vector.load %arg3[%c0_4, %c0_5] : memref<1x32xf32, #tpu.memory_space<vmem>>, vector<1x32xf32>
    %cst = arith.constant dense<0.000000e+00> : vector<16xf32>
    %4 = vector.multi_reduction <add>, %1, %cst [1] : vector<16x32xf32> to vector<16xf32>
    %5 = vector.shape_cast %4 : vector<16xf32> to vector<16x1xf32>
    %cst_6 = arith.constant 3.200000e+01 : f32
    %6 = vector.broadcast %cst_6 : f32 to vector<16x1xf32>
    %7 = arith.divf %5, %6 : vector<16x1xf32>
    %8 = vector.broadcast %7 : vector<16x1xf32> to vector<16x32xf32>
    %9 = arith.subf %1, %8 : vector<16x32xf32>
    %10 = arith.mulf %9, %9 : vector<16x32xf32>
    %cst_7 = arith.constant dense<0.000000e+00> : vector<16xf32>
    %11 = vector.multi_reduction <add>, %10, %cst_7 [1] : vector<16x32xf32> to vector<16xf32>
    %12 = vector.shape_cast %11 : vector<16xf32> to vector<16x1xf32>
    %cst_8 = arith.constant 3.200000e+01 : f32
    %13 = vector.broadcast %cst_8 : f32 to vector<16x1xf32>
    %14 = arith.divf %12, %13 : vector<16x1xf32>
    %15 = vector.broadcast %7 : vector<16x1xf32> to vector<16x32xf32>
    %16 = arith.subf %1, %15 : vector<16x32xf32>
    %cst_9 = arith.constant 9.99999974E-6 : f32
    %17 = vector.broadcast %cst_9 : f32 to vector<16x1xf32>
    %18 = arith.addf %14, %17 : vector<16x1xf32>
    %19 = math.rsqrt %18 : vector<16x1xf32>
    %20 = vector.broadcast %19 : vector<16x1xf32> to vector<16x32xf32>
    %21 = arith.mulf %16, %20 : vector<16x32xf32>
    %22 = vector.broadcast %2 : vector<1x32xf32> to vector<16x32xf32>
    %23 = arith.mulf %21, %22 : vector<16x32xf32>
    %24 = vector.broadcast %3 : vector<1x32xf32> to vector<16x32xf32>
    %25 = arith.addf %23, %24 : vector<16x32xf32>
    %26 = arith.truncf %25 : vector<16x32xf32> to vector<16x32xbf16>
    %c0_10 = arith.constant 0 : index
    %c0_11 = arith.constant 0 : index
    %27 = vector.load %arg4[%c0_10, %c0_11] : memref<32x96xbf16, #tpu.memory_space<vmem>>, vector<32x96xbf16>
    %cst_12 = arith.constant dense<0.000000e+00> : vector<16x96xf32>
    %28 = tpu.matmul %26, %27, %cst_12 {dimension_numbers = #tpu.dot_dimension_numbers<[1], [0], [0], [1], [0, 0, 1, 1], [], []>} : vector<16x32xbf16>, vector<32x96xbf16>, vector<16x96xf32> -> vector<16x96xf32>
    %c0_13 = arith.constant 0 : index
    %c0_14 = arith.constant 0 : index
    %29 = vector.load %arg5[%c0_13, %c0_14] : memref<1x96xf32, #tpu.memory_space<vmem>>, vector<1x96xf32>
    %30 = vector.broadcast %29 : vector<1x96xf32> to vector<16x96xf32>
    %31 = arith.addf %28, %30 : vector<16x96xf32>
    %c0_15 = arith.constant 0 : index
    %c0_16 = arith.constant 0 : index
    %32 = vector.load %arg6[%c0_15, %c0_16] : memref<32x32xbf16, #tpu.memory_space<vmem>>, vector<32x32xbf16>
    %cst_17 = arith.constant 0.000000e+00 : f32
    %33 = vector.broadcast %cst_17 : f32 to vector<16x32xf32>
    %34 = vector.extract_strided_slice %31 {offsets = [0, 0], sizes = [16, 8], strides = [1, 1]} : vector<16x96xf32> to vector<16x8xf32>
    %cst_18 = arith.constant 0.353553385 : f32
    %35 = vector.broadcast %cst_18 : f32 to vector<16x8xf32>
    %36 = arith.mulf %34, %35 : vector<16x8xf32>
    %37 = arith.truncf %36 : vector<16x8xf32> to vector<16x8xbf16>
    %38 = vector.shape_cast %37 : vector<16x8xbf16> to vector<2x8x8xbf16>
    %39 = vector.extract_strided_slice %31 {offsets = [0, 32], sizes = [16, 8], strides = [1, 1]} : vector<16x96xf32> to vector<16x8xf32>
    %40 = arith.truncf %39 : vector<16x8xf32> to vector<16x8xbf16>
    %41 = vector.shape_cast %40 : vector<16x8xbf16> to vector<2x8x8xbf16>
    %42 = vector.extract_strided_slice %31 {offsets = [0, 64], sizes = [16, 8], strides = [1, 1]} : vector<16x96xf32> to vector<16x8xf32>
    %43 = arith.truncf %42 : vector<16x8xf32> to vector<16x8xbf16>
    %44 = vector.shape_cast %43 : vector<16x8xbf16> to vector<2x8x8xbf16>
    "tpu.trace_start"() <{level = 10 : i32, message = "bqd,bkd->bqk"}> : () -> ()
    %cst_19 = arith.constant dense<0.000000e+00> : vector<2x8x8xf32>
    %45 = tpu.matmul %38, %41, %cst_19 {dimension_numbers = #tpu.dot_dimension_numbers<[2], [2], [1], [1], [0, 0, 0, 1, 1, 1], [0], [0]>} : vector<2x8x8xbf16>, vector<2x8x8xbf16>, vector<2x8x8xf32> -> vector<2x8x8xf32>
    "tpu.trace_stop"() : () -> ()
    %cst_20 = arith.constant dense<0xFF800000> : vector<2x8xf32>
    %46 = vector.multi_reduction <maximumf>, %45, %cst_20 [2] : vector<2x8x8xf32> to vector<2x8xf32>
    %47 = vector.shape_cast %46 : vector<2x8xf32> to vector<2x8x1xf32>
    %48 = vector.broadcast %47 : vector<2x8x1xf32> to vector<2x8x8xf32>
    %49 = arith.subf %45, %48 : vector<2x8x8xf32>
    %50 = math.exp %49 : vector<2x8x8xf32>
    %cst_21 = arith.constant dense<0.000000e+00> : vector<2x8xf32>
    %51 = vector.multi_reduction <add>, %50, %cst_21 [2] : vector<2x8x8xf32> to vector<2x8xf32>
    %52 = vector.shape_cast %51 : vector<2x8xf32> to vector<2x8x1xf32>
    %53 = tpu.reciprocal %52 {approx = true} : vector<2x8x1xf32> -> vector<2x8x1xf32>
    %54 = vector.broadcast %53 : vector<2x8x1xf32> to vector<2x8x8xf32>
    %55 = arith.mulf %50, %54 : vector<2x8x8xf32>
    %56 = arith.truncf %55 : vector<2x8x8xf32> to vector<2x8x8xbf16>
    "tpu.trace_start"() <{level = 10 : i32, message = "bqk,bkd->bqd"}> : () -> ()
    %cst_22 = arith.constant dense<0.000000e+00> : vector<2x8x8xf32>
    %57 = tpu.matmul %56, %44, %cst_22 {dimension_numbers = #tpu.dot_dimension_numbers<[2], [1], [1], [2], [0, 0, 0, 1, 1, 2], [0], [0]>} : vector<2x8x8xbf16>, vector<2x8x8xbf16>, vector<2x8x8xf32> -> vector<2x8x8xf32>
    "tpu.trace_stop"() : () -> ()
    %58 = vector.shape_cast %57 : vector<2x8x8xf32> to vector<16x8xf32>
    %59 = arith.truncf %58 : vector<16x8xf32> to vector<16x8xbf16>
    %60 = vector.extract_strided_slice %32 {offsets = [0, 0], sizes = [8, 32], strides = [1, 1]} : vector<32x32xbf16> to vector<8x32xbf16>
    %cst_23 = arith.constant dense<0.000000e+00> : vector<16x32xf32>
    %61 = tpu.matmul %59, %60, %cst_23 {dimension_numbers = #tpu.dot_dimension_numbers<[1], [0], [0], [1], [0, 0, 1, 1], [], []>} : vector<16x8xbf16>, vector<8x32xbf16>, vector<16x32xf32> -> vector<16x32xf32>
    %62 = arith.addf %33, %61 : vector<16x32xf32>
    %63 = vector.extract_strided_slice %31 {offsets = [0, 8], sizes = [16, 8], strides = [1, 1]} : vector<16x96xf32> to vector<16x8xf32>
    %cst_24 = arith.constant 0.353553385 : f32
    %64 = vector.broadcast %cst_24 : f32 to vector<16x8xf32>
    %65 = arith.mulf %63, %64 : vector<16x8xf32>
    %66 = arith.truncf %65 : vector<16x8xf32> to vector<16x8xbf16>
    %67 = vector.shape_cast %66 : vector<16x8xbf16> to vector<2x8x8xbf16>
    %68 = vector.extract_strided_slice %31 {offsets = [0, 40], sizes = [16, 8], strides = [1, 1]} : vector<16x96xf32> to vector<16x8xf32>
    %69 = arith.truncf %68 : vector<16x8xf32> to vector<16x8xbf16>
    %70 = vector.shape_cast %69 : vector<16x8xbf16> to vector<2x8x8xbf16>
    %71 = vector.extract_strided_slice %31 {offsets = [0, 72], sizes = [16, 8], strides = [1, 1]} : vector<16x96xf32> to vector<16x8xf32>
    %72 = arith.truncf %71 : vector<16x8xf32> to vector<16x8xbf16>
    %73 = vector.shape_cast %72 : vector<16x8xbf16> to vector<2x8x8xbf16>
    "tpu.trace_start"() <{level = 10 : i32, message = "bqd,bkd->bqk"}> : () -> ()
    %cst_25 = arith.constant dense<0.000000e+00> : vector<2x8x8xf32>
    %74 = tpu.matmul %67, %70, %cst_25 {dimension_numbers = #tpu.dot_dimension_numbers<[2], [2], [1], [1], [0, 0, 0, 1, 1, 1], [0], [0]>} : vector<2x8x8xbf16>, vector<2x8x8xbf16>, vector<2x8x8xf32> -> vector<2x8x8xf32>
    "tpu.trace_stop"() : () -> ()
    %cst_26 = arith.constant dense<0xFF800000> : vector<2x8xf32>
    %75 = vector.multi_reduction <maximumf>, %74, %cst_26 [2] : vector<2x8x8xf32> to vector<2x8xf32>
    %76 = vector.shape_cast %75 : vector<2x8xf32> to vector<2x8x1xf32>
    %77 = vector.broadcast %76 : vector<2x8x1xf32> to vector<2x8x8xf32>
    %78 = arith.subf %74, %77 : vector<2x8x8xf32>
    %79 = math.exp %78 : vector<2x8x8xf32>
    %cst_27 = arith.constant dense<0.000000e+00> : vector<2x8xf32>
    %80 = vector.multi_reduction <add>, %79, %cst_27 [2] : vector<2x8x8xf32> to vector<2x8xf32>
    %81 = vector.shape_cast %80 : vector<2x8xf32> to vector<2x8x1xf32>
    %82 = tpu.reciprocal %81 {approx = true} : vector<2x8x1xf32> -> vector<2x8x1xf32>
    %83 = vector.broadcast %82 : vector<2x8x1xf32> to vector<2x8x8xf32>
    %84 = arith.mulf %79, %83 : vector<2x8x8xf32>
    %85 = arith.truncf %84 : vector<2x8x8xf32> to vector<2x8x8xbf16>
    "tpu.trace_start"() <{level = 10 : i32, message = "bqk,bkd->bqd"}> : () -> ()
    %cst_28 = arith.constant dense<0.000000e+00> : vector<2x8x8xf32>
    %86 = tpu.matmul %85, %73, %cst_28 {dimension_numbers = #tpu.dot_dimension_numbers<[2], [1], [1], [2], [0, 0, 0, 1, 1, 2], [0], [0]>} : vector<2x8x8xbf16>, vector<2x8x8xbf16>, vector<2x8x8xf32> -> vector<2x8x8xf32>
    "tpu.trace_stop"() : () -> ()
    %87 = vector.shape_cast %86 : vector<2x8x8xf32> to vector<16x8xf32>
    %88 = arith.truncf %87 : vector<16x8xf32> to vector<16x8xbf16>
    %89 = vector.extract_strided_slice %32 {offsets = [8, 0], sizes = [8, 32], strides = [1, 1]} : vector<32x32xbf16> to vector<8x32xbf16>
    %cst_29 = arith.constant dense<0.000000e+00> : vector<16x32xf32>
    %90 = tpu.matmul %88, %89, %cst_29 {dimension_numbers = #tpu.dot_dimension_numbers<[1], [0], [0], [1], [0, 0, 1, 1], [], []>} : vector<16x8xbf16>, vector<8x32xbf16>, vector<16x32xf32> -> vector<16x32xf32>
    %91 = arith.addf %62, %90 : vector<16x32xf32>
    %92 = vector.extract_strided_slice %31 {offsets = [0, 16], sizes = [16, 8], strides = [1, 1]} : vector<16x96xf32> to vector<16x8xf32>
    %cst_30 = arith.constant 0.353553385 : f32
    %93 = vector.broadcast %cst_30 : f32 to vector<16x8xf32>
    %94 = arith.mulf %92, %93 : vector<16x8xf32>
    %95 = arith.truncf %94 : vector<16x8xf32> to vector<16x8xbf16>
    %96 = vector.shape_cast %95 : vector<16x8xbf16> to vector<2x8x8xbf16>
    %97 = vector.extract_strided_slice %31 {offsets = [0, 48], sizes = [16, 8], strides = [1, 1]} : vector<16x96xf32> to vector<16x8xf32>
    %98 = arith.truncf %97 : vector<16x8xf32> to vector<16x8xbf16>
    %99 = vector.shape_cast %98 : vector<16x8xbf16> to vector<2x8x8xbf16>
    %100 = vector.extract_strided_slice %31 {offsets = [0, 80], sizes = [16, 8], strides = [1, 1]} : vector<16x96xf32> to vector<16x8xf32>
    %101 = arith.truncf %100 : vector<16x8xf32> to vector<16x8xbf16>
    %102 = vector.shape_cast %101 : vector<16x8xbf16> to vector<2x8x8xbf16>
    "tpu.trace_start"() <{level = 10 : i32, message = "bqd,bkd->bqk"}> : () -> ()
    %cst_31 = arith.constant dense<0.000000e+00> : vector<2x8x8xf32>
    %103 = tpu.matmul %96, %99, %cst_31 {dimension_numbers = #tpu.dot_dimension_numbers<[2], [2], [1], [1], [0, 0, 0, 1, 1, 1], [0], [0]>} : vector<2x8x8xbf16>, vector<2x8x8xbf16>, vector<2x8x8xf32> -> vector<2x8x8xf32>
    "tpu.trace_stop"() : () -> ()
    %cst_32 = arith.constant dense<0xFF800000> : vector<2x8xf32>
    %104 = vector.multi_reduction <maximumf>, %103, %cst_32 [2] : vector<2x8x8xf32> to vector<2x8xf32>
    %105 = vector.shape_cast %104 : vector<2x8xf32> to vector<2x8x1xf32>
    %106 = vector.broadcast %105 : vector<2x8x1xf32> to vector<2x8x8xf32>
    %107 = arith.subf %103, %106 : vector<2x8x8xf32>
    %108 = math.exp %107 : vector<2x8x8xf32>
    %cst_33 = arith.constant dense<0.000000e+00> : vector<2x8xf32>
    %109 = vector.multi_reduction <add>, %108, %cst_33 [2] : vector<2x8x8xf32> to vector<2x8xf32>
    %110 = vector.shape_cast %109 : vector<2x8xf32> to vector<2x8x1xf32>
    %111 = tpu.reciprocal %110 {approx = true} : vector<2x8x1xf32> -> vector<2x8x1xf32>
    %112 = vector.broadcast %111 : vector<2x8x1xf32> to vector<2x8x8xf32>
    %113 = arith.mulf %108, %112 : vector<2x8x8xf32>
    %114 = arith.truncf %113 : vector<2x8x8xf32> to vector<2x8x8xbf16>
    "tpu.trace_start"() <{level = 10 : i32, message = "bqk,bkd->bqd"}> : () -> ()
    %cst_34 = arith.constant dense<0.000000e+00> : vector<2x8x8xf32>
    %115 = tpu.matmul %114, %102, %cst_34 {dimension_numbers = #tpu.dot_dimension_numbers<[2], [1], [1], [2], [0, 0, 0, 1, 1, 2], [0], [0]>} : vector<2x8x8xbf16>, vector<2x8x8xbf16>, vector<2x8x8xf32> -> vector<2x8x8xf32>
    "tpu.trace_stop"() : () -> ()
    %116 = vector.shape_cast %115 : vector<2x8x8xf32> to vector<16x8xf32>
    %117 = arith.truncf %116 : vector<16x8xf32> to vector<16x8xbf16>
    %118 = vector.extract_strided_slice %32 {offsets = [16, 0], sizes = [8, 32], strides = [1, 1]} : vector<32x32xbf16> to vector<8x32xbf16>
    %cst_35 = arith.constant dense<0.000000e+00> : vector<16x32xf32>
    %119 = tpu.matmul %117, %118, %cst_35 {dimension_numbers = #tpu.dot_dimension_numbers<[1], [0], [0], [1], [0, 0, 1, 1], [], []>} : vector<16x8xbf16>, vector<8x32xbf16>, vector<16x32xf32> -> vector<16x32xf32>
    %120 = arith.addf %91, %119 : vector<16x32xf32>
    %121 = vector.extract_strided_slice %31 {offsets = [0, 24], sizes = [16, 8], strides = [1, 1]} : vector<16x96xf32> to vector<16x8xf32>
    %cst_36 = arith.constant 0.353553385 : f32
    %122 = vector.broadcast %cst_36 : f32 to vector<16x8xf32>
    %123 = arith.mulf %121, %122 : vector<16x8xf32>
    %124 = arith.truncf %123 : vector<16x8xf32> to vector<16x8xbf16>
    %125 = vector.shape_cast %124 : vector<16x8xbf16> to vector<2x8x8xbf16>
    %126 = vector.extract_strided_slice %31 {offsets = [0, 56], sizes = [16, 8], strides = [1, 1]} : vector<16x96xf32> to vector<16x8xf32>
    %127 = arith.truncf %126 : vector<16x8xf32> to vector<16x8xbf16>
    %128 = vector.shape_cast %127 : vector<16x8xbf16> to vector<2x8x8xbf16>
    %129 = vector.extract_strided_slice %31 {offsets = [0, 88], sizes = [16, 8], strides = [1, 1]} : vector<16x96xf32> to vector<16x8xf32>
    %130 = arith.truncf %129 : vector<16x8xf32> to vector<16x8xbf16>
    %131 = vector.shape_cast %130 : vector<16x8xbf16> to vector<2x8x8xbf16>
    "tpu.trace_start"() <{level = 10 : i32, message = "bqd,bkd->bqk"}> : () -> ()
    %cst_37 = arith.constant dense<0.000000e+00> : vector<2x8x8xf32>
    %132 = tpu.matmul %125, %128, %cst_37 {dimension_numbers = #tpu.dot_dimension_numbers<[2], [2], [1], [1], [0, 0, 0, 1, 1, 1], [0], [0]>} : vector<2x8x8xbf16>, vector<2x8x8xbf16>, vector<2x8x8xf32> -> vector<2x8x8xf32>
    "tpu.trace_stop"() : () -> ()
    %cst_38 = arith.constant dense<0xFF800000> : vector<2x8xf32>
    %133 = vector.multi_reduction <maximumf>, %132, %cst_38 [2] : vector<2x8x8xf32> to vector<2x8xf32>
    %134 = vector.shape_cast %133 : vector<2x8xf32> to vector<2x8x1xf32>
    %135 = vector.broadcast %134 : vector<2x8x1xf32> to vector<2x8x8xf32>
    %136 = arith.subf %132, %135 : vector<2x8x8xf32>
    %137 = math.exp %136 : vector<2x8x8xf32>
    %cst_39 = arith.constant dense<0.000000e+00> : vector<2x8xf32>
    %138 = vector.multi_reduction <add>, %137, %cst_39 [2] : vector<2x8x8xf32> to vector<2x8xf32>
    %139 = vector.shape_cast %138 : vector<2x8xf32> to vector<2x8x1xf32>
    %140 = tpu.reciprocal %139 {approx = true} : vector<2x8x1xf32> -> vector<2x8x1xf32>
    %141 = vector.broadcast %140 : vector<2x8x1xf32> to vector<2x8x8xf32>
    %142 = arith.mulf %137, %141 : vector<2x8x8xf32>
    %143 = arith.truncf %142 : vector<2x8x8xf32> to vector<2x8x8xbf16>
    "tpu.trace_start"() <{level = 10 : i32, message = "bqk,bkd->bqd"}> : () -> ()
    %cst_40 = arith.constant dense<0.000000e+00> : vector<2x8x8xf32>
    %144 = tpu.matmul %143, %131, %cst_40 {dimension_numbers = #tpu.dot_dimension_numbers<[2], [1], [1], [2], [0, 0, 0, 1, 1, 2], [0], [0]>} : vector<2x8x8xbf16>, vector<2x8x8xbf16>, vector<2x8x8xf32> -> vector<2x8x8xf32>
    "tpu.trace_stop"() : () -> ()
    %145 = vector.shape_cast %144 : vector<2x8x8xf32> to vector<16x8xf32>
    %146 = arith.truncf %145 : vector<16x8xf32> to vector<16x8xbf16>
    %147 = vector.extract_strided_slice %32 {offsets = [24, 0], sizes = [8, 32], strides = [1, 1]} : vector<32x32xbf16> to vector<8x32xbf16>
    %cst_41 = arith.constant dense<0.000000e+00> : vector<16x32xf32>
    %148 = tpu.matmul %146, %147, %cst_41 {dimension_numbers = #tpu.dot_dimension_numbers<[1], [0], [0], [1], [0, 0, 1, 1], [], []>} : vector<16x8xbf16>, vector<8x32xbf16>, vector<16x32xf32> -> vector<16x32xf32>
    %149 = arith.addf %120, %148 : vector<16x32xf32>
    %c0_42 = arith.constant 0 : index
    %c0_43 = arith.constant 0 : index
    %150 = vector.load %arg7[%c0_42, %c0_43] : memref<1x32xf32, #tpu.memory_space<vmem>>, vector<1x32xf32>
    %151 = vector.broadcast %150 : vector<1x32xf32> to vector<16x32xf32>
    %152 = arith.addf %149, %151 : vector<16x32xf32>
    %153 = arith.addf %1, %152 : vector<16x32xf32>
    %c0_44 = arith.constant 0 : index
    %c0_45 = arith.constant 0 : index
    %154 = vector.load %arg8[%c0_44, %c0_45] : memref<1x32xf32, #tpu.memory_space<vmem>>, vector<1x32xf32>
    %c0_46 = arith.constant 0 : index
    %c0_47 = arith.constant 0 : index
    %155 = vector.load %arg9[%c0_46, %c0_47] : memref<1x32xf32, #tpu.memory_space<vmem>>, vector<1x32xf32>
    %cst_48 = arith.constant dense<0.000000e+00> : vector<16xf32>
    %156 = vector.multi_reduction <add>, %153, %cst_48 [1] : vector<16x32xf32> to vector<16xf32>
    %157 = vector.shape_cast %156 : vector<16xf32> to vector<16x1xf32>
    %cst_49 = arith.constant 3.200000e+01 : f32
    %158 = vector.broadcast %cst_49 : f32 to vector<16x1xf32>
    %159 = arith.divf %157, %158 : vector<16x1xf32>
    %160 = vector.broadcast %159 : vector<16x1xf32> to vector<16x32xf32>
    %161 = arith.subf %153, %160 : vector<16x32xf32>
    %162 = arith.mulf %161, %161 : vector<16x32xf32>
    %cst_50 = arith.constant dense<0.000000e+00> : vector<16xf32>
    %163 = vector.multi_reduction <add>, %162, %cst_50 [1] : vector<16x32xf32> to vector<16xf32>
    %164 = vector.shape_cast %163 : vector<16xf32> to vector<16x1xf32>
    %cst_51 = arith.constant 3.200000e+01 : f32
    %165 = vector.broadcast %cst_51 : f32 to vector<16x1xf32>
    %166 = arith.divf %164, %165 : vector<16x1xf32>
    %167 = vector.broadcast %159 : vector<16x1xf32> to vector<16x32xf32>
    %168 = arith.subf %153, %167 : vector<16x32xf32>
    %cst_52 = arith.constant 9.99999974E-6 : f32
    %169 = vector.broadcast %cst_52 : f32 to vector<16x1xf32>
    %170 = arith.addf %166, %169 : vector<16x1xf32>
    %171 = math.rsqrt %170 : vector<16x1xf32>
    %172 = vector.broadcast %171 : vector<16x1xf32> to vector<16x32xf32>
    %173 = arith.mulf %168, %172 : vector<16x32xf32>
    %174 = vector.broadcast %154 : vector<1x32xf32> to vector<16x32xf32>
    %175 = arith.mulf %173, %174 : vector<16x32xf32>
    %176 = vector.broadcast %155 : vector<1x32xf32> to vector<16x32xf32>
    %177 = arith.addf %175, %176 : vector<16x32xf32>
    %178 = arith.truncf %177 : vector<16x32xf32> to vector<16x32xbf16>
    %c0_53 = arith.constant 0 : index
    %c0_54 = arith.constant 0 : index
    %179 = vector.load %arg10[%c0_53, %c0_54] : memref<32x128xbf16, #tpu.memory_space<vmem>>, vector<32x128xbf16>
    %cst_55 = arith.constant dense<0.000000e+00> : vector<16x128xf32>
    %180 = tpu.matmul %178, %179, %cst_55 {dimension_numbers = #tpu.dot_dimension_numbers<[1], [0], [0], [1], [0, 0, 1, 1], [], []>} : vector<16x32xbf16>, vector<32x128xbf16>, vector<16x128xf32> -> vector<16x128xf32>
    %c0_56 = arith.constant 0 : index
    %c0_57 = arith.constant 0 : index
    %181 = vector.load %arg11[%c0_56, %c0_57] : memref<1x128xf32, #tpu.memory_space<vmem>>, vector<1x128xf32>
    %182 = vector.broadcast %181 : vector<1x128xf32> to vector<16x128xf32>
    %183 = arith.addf %180, %182 : vector<16x128xf32>
    %cst_58 = arith.constant -1.702000e+00 : f32
    %184 = vector.broadcast %cst_58 : f32 to vector<16x128xf32>
    %185 = arith.mulf %184, %183 : vector<16x128xf32>
    %186 = math.exp %185 : vector<16x128xf32>
    %cst_59 = arith.constant 1.000000e+00 : f32
    %187 = vector.broadcast %cst_59 : f32 to vector<16x128xf32>
    %188 = arith.addf %187, %186 : vector<16x128xf32>
    %cst_60 = arith.constant 1.000000e+00 : f32
    %189 = vector.broadcast %cst_60 : f32 to vector<16x128xf32>
    %190 = arith.divf %189, %188 : vector<16x128xf32>
    %191 = arith.mulf %183, %190 : vector<16x128xf32>
    %192 = arith.truncf %191 : vector<16x128xf32> to vector<16x128xbf16>
    %c0_61 = arith.constant 0 : index
    %c0_62 = arith.constant 0 : index
    %193 = vector.load %arg12[%c0_61, %c0_62] : memref<128x32xbf16, #tpu.memory_space<vmem>>, vector<128x32xbf16>
    %cst_63 = arith.constant dense<0.000000e+00> : vector<16x32xf32>
    %194 = tpu.matmul %192, %193, %cst_63 {dimension_numbers = #tpu.dot_dimension_numbers<[1], [0], [0], [1], [0, 0, 1, 1], [], []>} : vector<16x128xbf16>, vector<128x32xbf16>, vector<16x32xf32> -> vector<16x32xf32>
    %c0_64 = arith.constant 0 : index
    %c0_65 = arith.constant 0 : index
    %195 = vector.load %arg13[%c0_64, %c0_65] : memref<1x32xf32, #tpu.memory_space<vmem>>, vector<1x32xf32>
    %196 = vector.broadcast %195 : vector<1x32xf32> to vector<16x32xf32>
    %197 = arith.addf %194, %196 : vector<16x32xf32>
    %198 = arith.addf %153, %197 : vector<16x32xf32>
    %199 = vector.shape_cast %198 : vector<16x32xf32> to vector<2x8x32xf32>
    %c0_66 = arith.constant 0 : index
    %c0_67 = arith.constant 0 : index
    %c0_68 = arith.constant 0 : index
    %200 = vector.load %arg14[%c0_66, %c0_67, %c0_68] : memref<2x8x32xf32, #tpu.memory_space<vmem>>, vector<2x8x32xf32>
    tpu.vector_store %arg14[%c0_66, %c0_67, %c0_68], %199 {strides = array<i32>} : memref<2x8x32xf32, #tpu.memory_space<vmem>>, vector<2x8x32xf32>,
    return
  }
  func.func @transform_0(%arg0: i32) -> (i32, i32, i32) {
    %c0_i32 = arith.constant 0 : i32
    %c0_i32_0 = arith.constant 0 : i32
    %c0_i32_1 = arith.constant 0 : i32
    return %arg0, %c0_i32, %c0_i32_0 : i32, i32, i32
  }
  func.func @transform_1(%arg0: i32) -> (i32, i32) {
    %c0_i32 = arith.constant 0 : i32
    %c0_i32_0 = arith.constant 0 : i32
    %c0_i32_1 = arith.constant 0 : i32
    return %c0_i32, %c0_i32_0 : i32, i32
  }
  func.func @transform_2(%arg0: i32) -> (i32, i32) {
    %c0_i32 = arith.constant 0 : i32
    %c0_i32_0 = arith.constant 0 : i32
    %c0_i32_1 = arith.constant 0 : i32
    return %c0_i32, %c0_i32_0 : i32, i32
  }
  func.func @transform_3(%arg0: i32) -> (i32, i32) {
    %c0_i32 = arith.constant 0 : i32
    %c0_i32_0 = arith.constant 0 : i32
    %c0_i32_1 = arith.constant 0 : i32
    return %c0_i32, %c0_i32_0 : i32, i32
  }
  func.func @transform_4(%arg0: i32) -> (i32, i32) {
    %c0_i32 = arith.constant 0 : i32
    %c0_i32_0 = arith.constant 0 : i32
    %c0_i32_1 = arith.constant 0 : i32
    return %c0_i32, %c0_i32_0 : i32, i32
  }
  func.func @transform_5(%arg0: i32) -> (i32, i32) {
    %c0_i32 = arith.constant 0 : i32
    %c0_i32_0 = arith.constant 0 : i32
    %c0_i32_1 = arith.constant 0 : i32
    return %c0_i32, %c0_i32_0 : i32, i32
  }
  func.func @transform_6(%arg0: i32) -> (i32, i32) {
    %c0_i32 = arith.constant 0 : i32
    %c0_i32_0 = arith.constant 0 : i32
    %c0_i32_1 = arith.constant 0 : i32
    return %c0_i32, %c0_i32_0 : i32, i32
  }
  func.func @transform_7(%arg0: i32) -> (i32, i32) {
    %c0_i32 = arith.constant 0 : i32
    %c0_i32_0 = arith.constant 0 : i32
    %c0_i32_1 = arith.constant 0 : i32
    return %c0_i32, %c0_i32_0 : i32, i32
  }
  func.func @transform_8(%arg0: i32) -> (i32, i32) {
    %c0_i32 = arith.constant 0 : i32
    %c0_i32_0 = arith.constant 0 : i32
    %c0_i32_1 = arith.constant 0 : i32
    return %c0_i32, %c0_i32_0 : i32, i32
  }
  func.func @transform_9(%arg0: i32) -> (i32, i32) {
    %c0_i32 = arith.constant 0 : i32
    %c0_i32_0 = arith.constant 0 : i32
    %c0_i32_1 = arith.constant 0 : i32
    return %c0_i32, %c0_i32_0 : i32, i32
  }
  func.func @transform_10(%arg0: i32) -> (i32, i32) {
    %c0_i32 = arith.constant 0 : i32
    %c0_i32_0 = arith.constant 0 : i32
    %c0_i32_1 = arith.constant 0 : i32
    return %c0_i32, %c0_i32_0 : i32, i32
  }
  func.func @transform_11(%arg0: i32) -> (i32, i32) {
    %c0_i32 = arith.constant 0 : i32
    %c0_i32_0 = arith.constant 0 : i32
    %c0_i32_1 = arith.constant 0 : i32
    return %c0_i32, %c0_i32_0 : i32, i32
  }
  func.func @transform_12(%arg0: i32) -> (i32, i32) {
    %c0_i32 = arith.constant 0 : i32
    %c0_i32_0 = arith.constant 0 : i32
    %c0_i32_1 = arith.constant 0 : i32
    return %c0_i32, %c0_i32_0 : i32, i32
  }
  func.func @transform_13(%arg0: i32) -> (i32, i32, i32) {
    %c0_i32 = arith.constant 0 : i32
    %c0_i32_0 = arith.constant 0 : i32
    %c0_i32_1 = arith.constant 0 : i32
    return %arg0, %c0_i32, %c0_i32_0 : i32, i32, i32
  }
}

</mosaic_0001>

<llo_original>
// kernel: tpu_custom_call.1
$region0: #{tpu_custom_call.1}
  #allocation0 [shape = 'u32[]', space=smem, size = 0x4, offset = 0x4, fixed_abs, tag = 'smem constant byte address 0x4 - core index']
  #allocation1 [shape = 'u32[144,128]{1,0:T(1,128)}', space=vmem, size = 0x12000, scoped, tag = 'internal scratch']
  %s0 = inlined_call_operand.hbm [shape: f32[2,8,32], index: 0, kind: input, shape index: {}]
  %s1 = inlined_call_operand.hbm [shape: f32[1,32], index: 1, kind: input, shape index: {}]
  %s2 = inlined_call_operand.hbm [shape: f32[1,32], index: 2, kind: input, shape index: {}]
  %s3 = inlined_call_operand.hbm [shape: bf16[32,96], index: 3, kind: input, shape index: {}]
  %s4 = inlined_call_operand.hbm [shape: f32[1,96], index: 4, kind: input, shape index: {}]
  %s5 = inlined_call_operand.hbm [shape: bf16[32,32], index: 5, kind: input, shape index: {}]
  %s6 = inlined_call_operand.hbm [shape: f32[1,32], index: 6, kind: input, shape index: {}]
  %s7 = inlined_call_operand.hbm [shape: f32[1,32], index: 7, kind: input, shape index: {}]
  %s8 = inlined_call_operand.hbm [shape: f32[1,32], index: 8, kind: input, shape index: {}]
  %s9 = inlined_call_operand.hbm [shape: bf16[32,128], index: 9, kind: input, shape index: {}]
  %s10 = inlined_call_operand.hbm [shape: f32[1,128], index: 10, kind: input, shape index: {}]
  %s11 = inlined_call_operand.hbm [shape: bf16[128,32], index: 11, kind: input, shape index: {}]
  %s12 = inlined_call_operand.hbm [shape: f32[1,32], index: 12, kind: input, shape index: {}]
  %s13 = inlined_call_operand.hbm [shape: f32[2,8,32], index: 13, kind: output, shape index: {}]
  %s14 = sld [smem:[#allocation0]]
  $region114: #{tpu_custom_call.1} parent=0
    _
  %s16 = ssub.s32 1, %s14
  %s17 = scalar_select 0, %s16, %s14
  $region1: #{tpu_custom_call.1} parent=0
    #allocation2 [shape = 'u8[8192]{0}', space=vmem, size = 0x2000, scoped, tag = 'input window, operand 0, single buffered']
    #allocation3 [shape = 's32[1]{0}', space=sflag, size = 0x4, scoped, tag = 'scoped memory for tpu_custom_call.1']
    #allocation4 [shape = 's32[1]{0}', space=sflag, size = 0x4, scoped, tag = 'scoped memory for tpu_custom_call.1']
    #allocation5 [shape = 'u8[512]{0}', space=vmem, size = 0x400, scoped, tag = 'input window, operand 1, single buffered']
    #allocation6 [shape = 's32[1]{0}', space=sflag, size = 0x4, scoped, tag = 'scoped memory for tpu_custom_call.1']
    #allocation7 [shape = 'u8[512]{0}', space=vmem, size = 0x400, scoped, tag = 'input window, operand 2, single buffered']
    #allocation8 [shape = 'u8[8192]{0}', space=vmem, size = 0x2000, scoped, tag = 'input window, operand 3, single buffered']
    #allocation9 [shape = 's32[1]{0}', space=sflag, size = 0x4, scoped, tag = 'scoped memory for tpu_custom_call.1']
    #allocation10 [shape = 'u8[512]{0}', space=vmem, size = 0x400, scoped, tag = 'input window, operand 4, single buffered']
    #allocation11 [shape = 'u8[8192]{0}', space=vmem, size = 0x2000, scoped, tag = 'input window, operand 5, single buffered']
    #allocation12 [shape = 's32[1]{0}', space=sflag, size = 0x4, scoped, tag = 'scoped memory for tpu_custom_call.1']
    #allocation13 [shape = 'u8[512]{0}', space=vmem, size = 0x400, scoped, tag = 'input window, operand 6, single buffered']
    #allocation14 [shape = 'u8[512]{0}', space=vmem, size = 0x400, scoped, tag = 'input window, operand 7, single buffered']
    #allocation15 [shape = 's32[1]{0}', space=sflag, size = 0x4, scoped, tag = 'scoped memory for tpu_custom_call.1']
    #allocation16 [shape = 'u8[512]{0}', space=vmem, size = 0x400, scoped, tag = 'input window, operand 8, single buffered']
    #allocation17 [shape = 'u8[8192]{0}', space=vmem, size = 0x2000, scoped, tag = 'input window, operand 9, single buffered']
    #allocation18 [shape = 's32[1]{0}', space=sflag, size = 0x4, scoped, tag = 'scoped memory for tpu_custom_call.1']
    #allocation19 [shape = 'u8[512]{0}', space=vmem, size = 0x400, scoped, tag = 'input window, operand 10, single buffered']
    #allocation20 [shape = 'u8[32768]{0}', space=vmem, size = 0x8000, scoped, tag = 'input window, operand 11, single buffered']
    #allocation21 [shape = 's32[1]{0}', space=sflag, size = 0x4, scoped, tag = 'scoped memory for tpu_custom_call.1']
    #allocation22 [shape = 'u8[512]{0}', space=vmem, size = 0x400, scoped, tag = 'input window, operand 12, single buffered']
    #allocation23 [shape = 'u8[8192]{0}', space=vmem, size = 0x2000, scoped, tag = 'output window, operand 0, single buffered']
    %18 = vsyncpa [#allocation3], 0
    %19 = vsyncpa [#allocation6], 0
    %20 = vsyncpa [#allocation9], 0
    %21 = vsyncpa [#allocation12], 0
    %22 = vsyncpa [#allocation15], 0
    %23 = vsyncpa [#allocation18], 0
    %24 = vsyncpa [#allocation21], 0
    %25 = vsyncpa [#allocation4], 0
    // Predicated region
    $region2: #{tpu_custom_call.1} parent=1 // pred_check
      _
    $region3: #{tpu_custom_call.1} parent=1 // pred_check_branch
      %27 = sbr.rel (0) target = $region5
    $region4: #{tpu_custom_call.1} parent=1 // pred_region
      %s29 = ssub.s32 256, 256
      %30 = vsyncadd [#allocation3], %s29
      %s31 = sshll.u32 [#allocation2], 4
      %s32 = int_to_ptr.vmem [resolvable:$true] %s31
      %37 = dma.hbm_to_vmem [thread:$0]  %s0, 256, %s32, [#allocation3], 128, 128, 8
    $region5: #{tpu_custom_call.1} parent=1 // pred_fallthru
      _
    // Predicated region
    $region6: #{tpu_custom_call.1} parent=1 // pred_check
      _
    $region7: #{tpu_custom_call.1} parent=1 // pred_check_branch
      %39 = sbr.rel (0) target = $region9
    $region8: #{tpu_custom_call.1} parent=1 // pred_region
      %s41 = ssub.s32 16, 16
      %42 = vsyncadd [#allocation6], %s41
      %s44 = sshll.u32 [#allocation5], 4
      %s45 = int_to_ptr.vmem [resolvable:$true] %s44
      %47 = dma.hbm_to_vmem [thread:$0]  %s1, 16, %s45, [#allocation6]
    $region9: #{tpu_custom_call.1} parent=1 // pred_fallthru
      _
    // Predicated region
    $region10: #{tpu_custom_call.1} parent=1 // pred_check
      _
    $region11: #{tpu_custom_call.1} parent=1 // pred_check_branch
      %49 = sbr.rel (0) target = $region13
    $region12: #{tpu_custom_call.1} parent=1 // pred_region
      %s51 = ssub.s32 16, 16
      %52 = vsyncadd [#allocation6], %s51
      %s54 = sshll.u32 [#allocation7], 4
      %s55 = int_to_ptr.vmem [resolvable:$true] %s54
      %57 = dma.hbm_to_vmem [thread:$0]  %s2, 16, %s55, [#allocation6]
    $region13: #{tpu_custom_call.1} parent=1 // pred_fallthru
      _
    // Predicated region
    $region14: #{tpu_custom_call.1} parent=1 // pred_check
      _
    $region15: #{tpu_custom_call.1} parent=1 // pred_check_branch
      %59 = sbr.rel (0) target = $region17
    $region16: #{tpu_custom_call.1} parent=1 // pred_region
      %s61 = ssub.s32 256, 256
      %62 = vsyncadd [#allocation9], %s61
      %s63 = sshll.u32 [#allocation8], 4
      %s64 = int_to_ptr.vmem [resolvable:$true] %s63
      %69 = dma.hbm_to_vmem [thread:$0]  %s3, 256, %s64, [#allocation9], 64, 64, 4
    $region17: #{tpu_custom_call.1} parent=1 // pred_fallthru
      _
    // Predicated region
    $region18: #{tpu_custom_call.1} parent=1 // pred_check
      _
    $region19: #{tpu_custom_call.1} parent=1 // pred_check_branch
      %71 = sbr.rel (0) target = $region21
    $region20: #{tpu_custom_call.1} parent=1 // pred_region
      %s73 = ssub.s32 16, 16
      %74 = vsyncadd [#allocation9], %s73
      %s76 = sshll.u32 [#allocation10], 4
      %s77 = int_to_ptr.vmem [resolvable:$true] %s76
      %79 = dma.hbm_to_vmem [thread:$0]  %s4, 16, %s77, [#allocation9]
    $region21: #{tpu_custom_call.1} parent=1 // pred_fallthru
      _
    // Predicated region
    $region22: #{tpu_custom_call.1} parent=1 // pred_check
      _
    $region23: #{tpu_custom_call.1} parent=1 // pred_check_branch
      %81 = sbr.rel (0) target = $region25
    $region24: #{tpu_custom_call.1} parent=1 // pred_region
      %s83 = ssub.s32 256, 256
      %84 = vsyncadd [#allocation12], %s83
      %s85 = sshll.u32 [#allocation11], 4
      %s86 = int_to_ptr.vmem [resolvable:$true] %s85
      %91 = dma.hbm_to_vmem [thread:$0]  %s5, 256, %s86, [#allocation12], 64, 64, 4
    $region25: #{tpu_custom_call.1} parent=1 // pred_fallthru
      _
    // Predicated region
    $region26: #{tpu_custom_call.1} parent=1 // pred_check
      _
    $region27: #{tpu_custom_call.1} parent=1 // pred_check_branch
      %93 = sbr.rel (0) target = $region29
    $region28: #{tpu_custom_call.1} parent=1 // pred_region
      %s95 = ssub.s32 16, 16
      %96 = vsyncadd [#allocation12], %s95
      %s98 = sshll.u32 [#allocation13], 4
      %s99 = int_to_ptr.vmem [resolvable:$true] %s98
      %101 = dma.hbm_to_vmem [thread:$0]  %s6, 16, %s99, [#allocation12]
    $region29: #{tpu_custom_call.1} parent=1 // pred_fallthru
      _
    // Predicated region
    $region30: #{tpu_custom_call.1} parent=1 // pred_check
      _
    $region31: #{tpu_custom_call.1} parent=1 // pred_check_branch
      %103 = sbr.rel (0) target = $region33
    $region32: #{tpu_custom_call.1} parent=1 // pred_region
      %s105 = ssub.s32 16, 16
      %106 = vsyncadd [#allocation15], %s105
      %s108 = sshll.u32 [#allocation14], 4
      %s109 = int_to_ptr.vmem [resolvable:$true] %s108
      %111 = dma.hbm_to_vmem [thread:$0]  %s7, 16, %s109, [#allocation15]
    $region33: #{tpu_custom_call.1} parent=1 // pred_fallthru
      _
    // Predicated region
    $region34: #{tpu_custom_call.1} parent=1 // pred_check
      _
    $region35: #{tpu_custom_call.1} parent=1 // pred_check_branch
      %113 = sbr.rel (0) target = $region37
    $region36: #{tpu_custom_call.1} parent=1 // pred_region
      %s115 = ssub.s32 16, 16
      %116 = vsyncadd [#allocation15], %s115
      %s118 = sshll.u32 [#allocation16], 4
      %s119 = int_to_ptr.vmem [resolvable:$true] %s118
      %121 = dma.hbm_to_vmem [thread:$0]  %s8, 16, %s119, [#allocation15]
    $region37: #{tpu_custom_call.1} parent=1 // pred_fallthru
      _
    // Predicated region
    $region38: #{tpu_custom_call.1} parent=1 // pred_check
      _
    $region39: #{tpu_custom_call.1} parent=1 // pred_check_branch
      %123 = sbr.rel (0) target = $region41
    $region40: #{tpu_custom_call.1} parent=1 // pred_region
      %s125 = ssub.s32 256, 256
      %126 = vsyncadd [#allocation18], %s125
      %s127 = sshll.u32 [#allocation17], 4
      %s128 = int_to_ptr.vmem [resolvable:$true] %s127
      %133 = dma.hbm_to_vmem [thread:$0]  %s9, 256, %s128, [#allocation18], 64, 64, 4
    $region41: #{tpu_custom_call.1} parent=1 // pred_fallthru
      _
    // Predicated region
    $region42: #{tpu_custom_call.1} parent=1 // pred_check
      _
    $region43: #{tpu_custom_call.1} parent=1 // pred_check_branch
      %135 = sbr.rel (0) target = $region45
    $region44: #{tpu_custom_call.1} parent=1 // pred_region
      %s137 = ssub.s32 16, 16
      %138 = vsyncadd [#allocation18], %s137
      %s140 = sshll.u32 [#allocation19], 4
      %s141 = int_to_ptr.vmem [resolvable:$true] %s140
      %143 = dma.hbm_to_vmem [thread:$0]  %s10, 16, %s141, [#allocation18]
    $region45: #{tpu_custom_call.1} parent=1 // pred_fallthru
      _
    // Predicated region
    $region46: #{tpu_custom_call.1} parent=1 // pred_check
      _
    $region47: #{tpu_custom_call.1} parent=1 // pred_check_branch
      %145 = sbr.rel (0) target = $region49
    $region48: #{tpu_custom_call.1} parent=1 // pred_region
      %s147 = ssub.s32 1024, 1024
      %148 = vsyncadd [#allocation21], %s147
      %s149 = sshll.u32 [#allocation20], 4
      %s150 = int_to_ptr.vmem [resolvable:$true] %s149
      %155 = dma.hbm_to_vmem [thread:$0]  %s11, 1024, %s150, [#allocation21], 64, 64, 4
    $region49: #{tpu_custom_call.1} parent=1 // pred_fallthru
      _
    // Predicated region
    $region50: #{tpu_custom_call.1} parent=1 // pred_check
      _
    $region51: #{tpu_custom_call.1} parent=1 // pred_check_branch
      %157 = sbr.rel (0) target = $region53
    $region52: #{tpu_custom_call.1} parent=1 // pred_region
      %s159 = ssub.s32 16, 16
      %160 = vsyncadd [#allocation21], %s159
      %s162 = sshll.u32 [#allocation22], 4
      %s163 = int_to_ptr.vmem [resolvable:$true] %s162
      %165 = dma.hbm_to_vmem [thread:$0]  %s12, 16, %s163, [#allocation21]
    $region53: #{tpu_custom_call.1} parent=1 // pred_fallthru
      _
    // Predicated region
    $region54: #{tpu_custom_call.1} parent=1 // pred_check
      _
    $region55: #{tpu_custom_call.1} parent=1 // pred_check_branch
      %167 = sbr.rel (0) target = $region57
    $region56: #{tpu_custom_call.1} parent=1 // pred_region
      %168 = dma.done [#allocation3], 256
    $region57: #{tpu_custom_call.1} parent=1 // pred_fallthru
      _
    // Predicated region
    $region58: #{tpu_custom_call.1} parent=1 // pred_check
      _
    $region59: #{tpu_custom_call.1} parent=1 // pred_check_branch
      %170 = sbr.rel (0) target = $region61
    $region60: #{tpu_custom_call.1} parent=1 // pred_region
      %171 = dma.done [#allocation6], 16
    $region61: #{tpu_custom_call.1} parent=1 // pred_fallthru
      _
    // Predicated region
    $region62: #{tpu_custom_call.1} parent=1 // pred_check
      _
    $region63: #{tpu_custom_call.1} parent=1 // pred_check_branch
      %173 = sbr.rel (0) target = $region65
    $region64: #{tpu_custom_call.1} parent=1 // pred_region
      %174 = dma.done [#allocation6], 16
    $region65: #{tpu_custom_call.1} parent=1 // pred_fallthru
      _
    // Predicated region
    $region66: #{tpu_custom_call.1} parent=1 // pred_check
      _
    $region67: #{tpu_custom_call.1} parent=1 // pred_check_branch
      %176 = sbr.rel (0) target = $region69
    $region68: #{tpu_custom_call.1} parent=1 // pred_region
      %177 = dma.done [#allocation9], 256
    $region69: #{tpu_custom_call.1} parent=1 // pred_fallthru
      _
    // Predicated region
    $region70: #{tpu_custom_call.1} parent=1 // pred_check
      _
    $region71: #{tpu_custom_call.1} parent=1 // pred_check_branch
      %179 = sbr.rel (0) target = $region73
    $region72: #{tpu_custom_call.1} parent=1 // pred_region
      %180 = dma.done [#allocation9], 16
    $region73: #{tpu_custom_call.1} parent=1 // pred_fallthru
      _
    // Predicated region
    $region74: #{tpu_custom_call.1} parent=1 // pred_check
      _
    $region75: #{tpu_custom_call.1} parent=1 // pred_check_branch
      %182 = sbr.rel (0) target = $region77
    $region76: #{tpu_custom_call.1} parent=1 // pred_region
      %183 = dma.done [#allocation12], 256
    $region77: #{tpu_custom_call.1} parent=1 // pred_fallthru
      _
    // Predicated region
    $region78: #{tpu_custom_call.1} parent=1 // pred_check
      _
    $region79: #{tpu_custom_call.1} parent=1 // pred_check_branch
      %185 = sbr.rel (0) target = $region81
    $region80: #{tpu_custom_call.1} parent=1 // pred_region
      %186 = dma.done [#allocation12], 16
    $region81: #{tpu_custom_call.1} parent=1 // pred_fallthru
      _
    // Predicated region
    $region82: #{tpu_custom_call.1} parent=1 // pred_check
      _
    $region83: #{tpu_custom_call.1} parent=1 // pred_check_branch
      %188 = sbr.rel (0) target = $region85
    $region84: #{tpu_custom_call.1} parent=1 // pred_region
      %189 = dma.done [#allocation15], 16
    $region85: #{tpu_custom_call.1} parent=1 // pred_fallthru
      _
    // Predicated region
    $region86: #{tpu_custom_call.1} parent=1 // pred_check
      _
    $region87: #{tpu_custom_call.1} parent=1 // pred_check_branch
      %191 = sbr.rel (0) target = $region89
    $region88: #{tpu_custom_call.1} parent=1 // pred_region
      %192 = dma.done [#allocation15], 16
    $region89: #{tpu_custom_call.1} parent=1 // pred_fallthru
      _
    // Predicated region
    $region90: #{tpu_custom_call.1} parent=1 // pred_check
      _
    $region91: #{tpu_custom_call.1} parent=1 // pred_check_branch
      %194 = sbr.rel (0) target = $region93
    $region92: #{tpu_custom_call.1} parent=1 // pred_region
      %195 = dma.done [#allocation18], 256
    $region93: #{tpu_custom_call.1} parent=1 // pred_fallthru
      _
    // Predicated region
    $region94: #{tpu_custom_call.1} parent=1 // pred_check
      _
    $region95: #{tpu_custom_call.1} parent=1 // pred_check_branch
      %197 = sbr.rel (0) target = $region97
    $region96: #{tpu_custom_call.1} parent=1 // pred_region
      %198 = dma.done [#allocation18], 16
    $region97: #{tpu_custom_call.1} parent=1 // pred_fallthru
      _
    // Predicated region
    $region98: #{tpu_custom_call.1} parent=1 // pred_check
      _
    $region99: #{tpu_custom_call.1} parent=1 // pred_check_branch
      %200 = sbr.rel (0) target = $region101
    $region100: #{tpu_custom_call.1} parent=1 // pred_region
      %201 = dma.done [#allocation21], 1024
    $region101: #{tpu_custom_call.1} parent=1 // pred_fallthru
      _
    // Predicated region
    $region102: #{tpu_custom_call.1} parent=1 // pred_check
      _
    $region103: #{tpu_custom_call.1} parent=1 // pred_check_branch
      %203 = sbr.rel (0) target = $region105
    $region104: #{tpu_custom_call.1} parent=1 // pred_region
      %204 = dma.done [#allocation21], 16
    $region105: #{tpu_custom_call.1} parent=1 // pred_fallthru
      _
    %v206 = vld [vmem:[#allocation2] sm:$0xff]
    %v207 = vld [vmem:[#allocation2 + $0x8] sm:$0xff]
    %v208 = vld [vmem:[#allocation5] sm:$0x1]
    %v209 = vld [vmem:[#allocation7] sm:$0x1]
    %vm210 = vcmask 261120
    %v211 = vsel %vm210, %v206, 0.0
    %212 = vadd.xlane.f32.xlu0 %v211
    %v213 = vpop.xlane.xlu0 %212
    %v214 = vsel %vm210, %v207, 0.0
    %215 = vadd.xlane.f32.xlu0 %v214
    %v216 = vpop.xlane.xlu0 %215
    %v217 = vrcp.pop 32.0
    %v218 = vmul.f32 %v213, %v217
    %v219 = vmul.f32 %v216, %v217
    %v220 = vsub.f32 %v206, %v218
    %v221 = vsub.f32 %v207, %v219
    %v222 = vmul.f32 %v220, %v220
    %v223 = vmul.f32 %v221, %v221
    %v224 = vsel %vm210, %v222, 0.0
    %225 = vadd.xlane.f32.xlu0 %v224
    %v226 = vpop.xlane.xlu0 %225
    %v227 = vsel %vm210, %v223, 0.0
    %228 = vadd.xlane.f32.xlu0 %v227
    %v229 = vpop.xlane.xlu0 %228
    %v230 = vmul.f32 %v226, %v217
    %v231 = vmul.f32 %v229, %v217
    %v232 = vadd.f32 %v230, 1e-05
    %v233 = vadd.f32 %v231, 1e-05
    %v234 = vrsqrt.pop %v232
    %v235 = vrsqrt.pop %v233
    %v236 = vmul.f32 %v220, %v234
    %v237 = vmul.f32 %v221, %v235
    %v239 = vlaneseq
    %v240 = vshrl.u32 %v239, 7
    %v241 = vsub.s32 0, %v240
    %v242 = vrot.slane %v208, %v241
    %v244 = vmul.f32 %v236, %v242
    %v245 = vmul.f32 %v237, %v242
    %v247 = vlaneseq
    %v248 = vshrl.u32 %v247, 7
    %v249 = vsub.s32 0, %v248
    %v250 = vrot.slane %v209, %v249
    %v252 = vadd.f32 %v244, %v250
    %v253 = vadd.f32 %v245, %v250
    %v254 = vpack.c.bf16 %v253, %v252
    %v255 = vld [vmem:[#allocation8] sm:$0xf]
    %v256 = vld [vmem:[#allocation8 + $0x4] sm:$0xf]
    %v257 = vld [vmem:[#allocation8 + $0x8] sm:$0xf]
    %v258 = vld [vmem:[#allocation8 + $0xc] sm:$0xf]
    %v259 = vld [vmem:[#allocation10] sm:$0x1]
    %v261 = vlaneseq
    %v262 = vshrl.u32 %v261, 7
    %v263 = vsub.s32 0, %v262
    %v264 = vrot.slane %v259, %v263
    %v270 = vunpack.c.l.b16 %v255
    %v271 = vunpack.c.l.b16 %v256
    %v272 = vunpack.c.l.b16 %v257
    %v273 = vunpack.c.l.b16 %v258
    %v274 = vpack.c.b16 %v271, %v270
    %v275 = vpack.c.b16 %v273, %v272
    %v279 = vsel %vm210, %v254, 0
    %281 = vmatprep.subr.bf16.mxu0 0
    %282 = vmatpush1.bf16.msra.mxu0 %v274
    %283 = vmatprep.subr.bf16.mxu0 0
    %284 = vmatpush1.bf16.msra.mxu0 %v275
    %285 = vmatprep.subr.bf16.mxu0 0
    %286 = vmatpush1.bf16.msra.mxu0 0
    %287 = vmatprep.subr.bf16.mxu0 0
    %288 = vmatpush1.bf16.msra.mxu0 0
    %289 = vmatprep.subr.bf16.mxu0 0
    %290 = vmatpush1.bf16.msra.mxu0 0
    %291 = vmatprep.subr.bf16.mxu0 0
    %292 = vmatpush1.bf16.msra.mxu0 0
    %293 = vmatprep.subr.bf16.mxu0 0
    %294 = vmatpush1.bf16.msra.mxu0 0
    %295 = vmatprep.subr.bf16.mxu0 0
    %296 = vmatpush1.bf16.msra.mxu0 0
    %297 = vmatprep.subr.bf16.mxu0 0
    %298 = vmatpush1.bf16.msra.mxu0 0
    %299 = vmatprep.subr.bf16.mxu0 0
    %300 = vmatpush1.bf16.msra.mxu0 0
    %301 = vmatprep.subr.bf16.mxu0 0
    %302 = vmatpush1.bf16.msra.mxu0 0
    %303 = vmatprep.subr.bf16.mxu0 0
    %304 = vmatpush1.bf16.msra.mxu0 0
    %305 = vmatprep.subr.bf16.mxu0 0
    %306 = vmatpush1.bf16.msra.mxu0 0
    %307 = vmatprep.subr.bf16.mxu0 0
    %308 = vmatpush1.bf16.msra.mxu0 0
    %309 = vmatprep.subr.bf16.mxu0 0
    %310 = vmatpush1.bf16.msra.mxu0 0
    %311 = vmatprep.subr.bf16.mxu0 0
    %312 = vmatpush1.bf16.msra.mxu0 0
    %313 = vmatprep.mubr.bf16.mxu0 0
    %314 = vmatmul.mubr.bf16.gmra.mrb[0].mxu0 %v279
    %v315 = vpop.f32.mrb[0].mxu0
    %v316 = vadd.f32 %v264, %v315
    %v317 = vpop.f32.mrb[0].mxu0
    %v318 = vpop.f32.mrb[0].mxu0
    %v319 = vadd.f32 %v264, %v318
    %v320 = vpop.f32.mrb[0].mxu0
    %321 = vdwg.mxu0
    %v322 = vld [vmem:[#allocation11] sm:$0xf]
    %v323 = vld [vmem:[#allocation11 + $0x4] sm:$0xf]
    %v324 = vld [vmem:[#allocation11 + $0x8] sm:$0xf]
    %v325 = vld [vmem:[#allocation11 + $0xc] sm:$0xf]
    %v326 = vmul.f32 %v316, 0.35355338
    %v327 = vmul.f32 %v319, 0.35355338
    %v328 = vpack.c.bf16 %v327, %v326
    %v330 = vunpack.c.l.b16 %v328
    %v331 = vunpack.c.h.b16 %v328
    %v332 = vpack.c.b16 %v330, %v330
    %v333 = vpack.c.b16 %v331, %v331
    %v334 = vpack.c.bf16 %v319, %v316
    %v336 = vunpack.c.l.b16 %v334
    %v337 = vunpack.c.h.b16 %v334
    %v338 = vpack.c.b16 %v336, %v336
    %339 = vrot.lane.b32.xlu0 %v338, 96
    %v340 = vpop.permute.xlu0 %339
    %vm341 = vcmask 64512
    %v343 = vsel %vm341, %v332, 0
    %v346 = vsel %vm341, %v340, 0
    %348 = vmatprep.subr.bf16.mxu0 0
    %349 = vmatpush1.bf16.xpose.msra.mxu0 %v346
    %350 = vmatprep.subr.bf16.mxu0 0
    %351 = vmatpush1.bf16.xpose.msra.mxu0 0
    %352 = vmatprep.subr.bf16.mxu0 0
    %353 = vmatpush1.bf16.xpose.msra.mxu0 0
    %354 = vmatprep.subr.bf16.mxu0 0
    %355 = vmatpush1.bf16.xpose.msra.mxu0 0
    %356 = vmatprep.subr.bf16.mxu0 0
    %357 = vmatpush1.bf16.xpose.msra.mxu0 0
    %358 = vmatprep.subr.bf16.mxu0 0
    %359 = vmatpush1.bf16.xpose.msra.mxu0 0
    %360 = vmatprep.subr.bf16.mxu0 0
    %361 = vmatpush1.bf16.xpose.msra.mxu0 0
    %362 = vmatprep.subr.bf16.mxu0 0
    %363 = vmatpush1.bf16.xpose.msra.mxu0 0
    %364 = vmatprep.subr.bf16.mxu0 0
    %365 = vmatpush1.bf16.xpose.msra.mxu0 0
    %366 = vmatprep.subr.bf16.mxu0 0
    %367 = vmatpush1.bf16.xpose.msra.mxu0 0
    %368 = vmatprep.subr.bf16.mxu0 0
    %369 = vmatpush1.bf16.xpose.msra.mxu0 0
    %370 = vmatprep.subr.bf16.mxu0 0
    %371 = vmatpush1.bf16.xpose.msra.mxu0 0
    %372 = vmatprep.subr.bf16.mxu0 0
    %373 = vmatpush1.bf16.xpose.msra.mxu0 0
    %374 = vmatprep.subr.bf16.mxu0 0
    %375 = vmatpush1.bf16.xpose.msra.mxu0 0
    %376 = vmatprep.subr.bf16.mxu0 0
    %377 = vmatpush1.bf16.xpose.msra.mxu0 0
    %378 = vmatprep.subr.bf16.mxu0 0
    %379 = vmatpush1.bf16.xpose.msra.mxu0 0
    %380 = vmatprep.mubr.bf16.mxu0 0
    %381 = vmatmul.mubr.bf16.gmra.mrb[0].mxu0 %v343
    %v382 = vpop.f32.mrb[0].mxu0
    %v383 = vadd.f32 0.0, %v382
    %v384 = vpop.f32.mrb[0].mxu0
    %v385 = vpop.f32.mrb[0].mxu0
    %v386 = vpop.f32.mrb[0].mxu0
    %387 = vdwg.mxu0
    %v388 = vpack.c.b16 %v337, %v337
    %389 = vrot.lane.b32.xlu0 %v388, 96
    %v390 = vpop.permute.xlu0 %389
    %v392 = vsel %vm341, %v333, 0
    %v395 = vsel %vm341, %v390, 0
    %397 = vmatprep.subr.bf16.mxu0 0
    %398 = vmatpush1.bf16.xpose.msra.mxu0 %v395
    %399 = vmatprep.subr.bf16.mxu0 0
    %400 = vmatpush1.bf16.xpose.msra.mxu0 0
    %401 = vmatprep.subr.bf16.mxu0 0
    %402 = vmatpush1.bf16.xpose.msra.mxu0 0
    %403 = vmatprep.subr.bf16.mxu0 0
    %404 = vmatpush1.bf16.xpose.msra.mxu0 0
    %405 = vmatprep.subr.bf16.mxu0 0
    %406 = vmatpush1.bf16.xpose.msra.mxu0 0
    %407 = vmatprep.subr.bf16.mxu0 0
    %408 = vmatpush1.bf16.xpose.msra.mxu0 0
    %409 = vmatprep.subr.bf16.mxu0 0
    %410 = vmatpush1.bf16.xpose.msra.mxu0 0
    %411 = vmatprep.subr.bf16.mxu0 0
    %412 = vmatpush1.bf16.xpose.msra.mxu0 0
    %413 = vmatprep.subr.bf16.mxu0 0
    %414 = vmatpush1.bf16.xpose.msra.mxu0 0
    %415 = vmatprep.subr.bf16.mxu0 0
    %416 = vmatpush1.bf16.xpose.msra.mxu0 0
    %417 = vmatprep.subr.bf16.mxu0 0
    %418 = vmatpush1.bf16.xpose.msra.mxu0 0
    %419 = vmatprep.subr.bf16.mxu0 0
    %420 = vmatpush1.bf16.xpose.msra.mxu0 0
    %421 = vmatprep.subr.bf16.mxu0 0
    %422 = vmatpush1.bf16.xpose.msra.mxu0 0
    %423 = vmatprep.subr.bf16.mxu0 0
    %424 = vmatpush1.bf16.xpose.msra.mxu0 0
    %425 = vmatprep.subr.bf16.mxu0 0
    %426 = vmatpush1.bf16.xpose.msra.mxu0 0
    %427 = vmatprep.subr.bf16.mxu0 0
    %428 = vmatpush1.bf16.xpose.msra.mxu0 0
    %429 = vmatprep.mubr.bf16.mxu0 0
    %430 = vmatmul.mubr.bf16.gmra.mrb[0].mxu0 %v392
    %v431 = vpop.f32.mrb[0].mxu0
    %v432 = vadd.f32 0.0, %v431
    %v433 = vpop.f32.mrb[0].mxu0
    %v434 = vpop.f32.mrb[0].mxu0
    %v435 = vpop.f32.mrb[0].mxu0
    %436 = vdwg.mxu0
    %v437 = vsel %vm341, %v383, -inf
    %438 = vmax.xlane.f32.xlu0 %v437
    %v439 = vpop.xlane.xlu0 %438
    %v440 = vsel %vm341, %v432, -inf
    %441 = vmax.xlane.f32.xlu0 %v440
    %v442 = vpop.xlane.xlu0 %441
    %v443 = vsub.f32 %v383, %v439
    %v444 = vsub.f32 %v432, %v442
    %v445 = vmul.f32 %v443, 1.442695
    %v446 = vpow.pop %v445
    %v447 = vmul.f32 %v444, 1.442695
    %v448 = vpow.pop %v447
    %v449 = vsel %vm341, %v446, 0.0
    %450 = vadd.xlane.f32.xlu0 %v449
    %v451 = vpop.xlane.xlu0 %450
    %v452 = vsel %vm341, %v448, 0.0
    %453 = vadd.xlane.f32.xlu0 %v452
    %v454 = vpop.xlane.xlu0 %453
    %v455 = vrcp.pop %v451
    %v456 = vrcp.pop %v454
    %v457 = vmul.f32 %v446, %v455
    %v458 = vmul.f32 %v448, %v456
    %v459 = vpack.c.bf16 %v457, %v457
    %v460 = vpack.c.bf16 %v458, %v458
    %461 = vrot.lane.b32.xlu0 %v338, 64
    %v462 = vpop.permute.xlu0 %461
    %v464 = vsel %vm341, %v459, 0
    %vm466 = vcmask 1043456
    %v468 = vsel %vm466, %v462, 0
    %470 = vmatprep.subr.bf16.mxu0 0
    %471 = vmatpush1.bf16.msra.mxu0 %v468
    %472 = vmatprep.subr.bf16.mxu0 0
    %473 = vmatpush1.bf16.msra.mxu0 0
    %474 = vmatprep.subr.bf16.mxu0 0
    %475 = vmatpush1.bf16.msra.mxu0 0
    %476 = vmatprep.subr.bf16.mxu0 0
    %477 = vmatpush1.bf16.msra.mxu0 0
    %478 = vmatprep.subr.bf16.mxu0 0
    %479 = vmatpush1.bf16.msra.mxu0 0
    %480 = vmatprep.subr.bf16.mxu0 0
    %481 = vmatpush1.bf16.msra.mxu0 0
    %482 = vmatprep.subr.bf16.mxu0 0
    %483 = vmatpush1.bf16.msra.mxu0 0
    %484 = vmatprep.subr.bf16.mxu0 0
    %485 = vmatpush1.bf16.msra.mxu0 0
    %486 = vmatprep.subr.bf16.mxu0 0
    %487 = vmatpush1.bf16.msra.mxu0 0
    %488 = vmatprep.subr.bf16.mxu0 0
    %489 = vmatpush1.bf16.msra.mxu0 0
    %490 = vmatprep.subr.bf16.mxu0 0
    %491 = vmatpush1.bf16.msra.mxu0 0
    %492 = vmatprep.subr.bf16.mxu0 0
    %493 = vmatpush1.bf16.msra.mxu0 0
    %494 = vmatprep.subr.bf16.mxu0 0
    %495 = vmatpush1.bf16.msra.mxu0 0
    %496 = vmatprep.subr.bf16.mxu0 0
    %497 = vmatpush1.bf16.msra.mxu0 0
    %498 = vmatprep.subr.bf16.mxu0 0
    %499 = vmatpush1.bf16.msra.mxu0 0
    %500 = vmatprep.subr.bf16.mxu0 0
    %501 = vmatpush1.bf16.msra.mxu0 0
    %502 = vmatprep.mubr.bf16.mxu0 0
    %503 = vmatmul.mubr.bf16.gmra.mrb[0].mxu0 %v464
    %v504 = vpop.f32.mrb[0].mxu0
    %v505 = vadd.f32 0.0, %v504
    %v506 = vpop.f32.mrb[0].mxu0
    %v507 = vpop.f32.mrb[0].mxu0
    %v508 = vpop.f32.mrb[0].mxu0
    %509 = vdwg.mxu0
    %510 = vrot.lane.b32.xlu0 %v388, 64
    %v511 = vpop.permute.xlu0 %510
    %v513 = vsel %vm341, %v460, 0
    %v516 = vsel %vm466, %v511, 0
    %518 = vmatprep.subr.bf16.mxu0 0
    %519 = vmatpush1.bf16.msra.mxu0 %v516
    %520 = vmatprep.subr.bf16.mxu0 0
    %521 = vmatpush1.bf16.msra.mxu0 0
    %522 = vmatprep.subr.bf16.mxu0 0
    %523 = vmatpush1.bf16.msra.mxu0 0
    %524 = vmatprep.subr.bf16.mxu0 0
    %525 = vmatpush1.bf16.msra.mxu0 0
    %526 = vmatprep.subr.bf16.mxu0 0
    %527 = vmatpush1.bf16.msra.mxu0 0
    %528 = vmatprep.subr.bf16.mxu0 0
    %529 = vmatpush1.bf16.msra.mxu0 0
    %530 = vmatprep.subr.bf16.mxu0 0
    %531 = vmatpush1.bf16.msra.mxu0 0
    %532 = vmatprep.subr.bf16.mxu0 0
    %533 = vmatpush1.bf16.msra.mxu0 0
    %534 = vmatprep.subr.bf16.mxu0 0
    %535 = vmatpush1.bf16.msra.mxu0 0
    %536 = vmatprep.subr.bf16.mxu0 0
    %537 = vmatpush1.bf16.msra.mxu0 0
    %538 = vmatprep.subr.bf16.mxu0 0
    %539 = vmatpush1.bf16.msra.mxu0 0
    %540 = vmatprep.subr.bf16.mxu0 0
    %541 = vmatpush1.bf16.msra.mxu0 0
    %542 = vmatprep.subr.bf16.mxu0 0
    %543 = vmatpush1.bf16.msra.mxu0 0
    %544 = vmatprep.subr.bf16.mxu0 0
    %545 = vmatpush1.bf16.msra.mxu0 0
    %546 = vmatprep.subr.bf16.mxu0 0
    %547 = vmatpush1.bf16.msra.mxu0 0
    %548 = vmatprep.subr.bf16.mxu0 0
    %549 = vmatpush1.bf16.msra.mxu0 0
    %550 = vmatprep.mubr.bf16.mxu0 0
    %551 = vmatmul.mubr.bf16.gmra.mrb[0].mxu0 %v513
    %v552 = vpop.f32.mrb[0].mxu0
    %v553 = vadd.f32 0.0, %v552
    %v554 = vpop.f32.mrb[0].mxu0
    %v555 = vpop.f32.mrb[0].mxu0
    %v556 = vpop.f32.mrb[0].mxu0
    %557 = vdwg.mxu0
    %v558 = vpack.c.bf16 %v553, %v505
    %559 = vrot.lane.b32.xlu0 %v332, 120
    %v560 = vpop.permute.xlu0 %559
    %561 = vrot.lane.b32.xlu0 %v338, 88
    %v562 = vpop.permute.xlu0 %561
    %v564 = vsel %vm341, %v560, 0
    %v567 = vsel %vm341, %v562, 0
    %569 = vmatprep.subr.bf16.mxu0 0
    %570 = vmatpush1.bf16.xpose.msra.mxu0 %v567
    %571 = vmatprep.subr.bf16.mxu0 0
    %572 = vmatpush1.bf16.xpose.msra.mxu0 0
    %573 = vmatprep.subr.bf16.mxu0 0
    %574 = vmatpush1.bf16.xpose.msra.mxu0 0
    %575 = vmatprep.subr.bf16.mxu0 0
    %576 = vmatpush1.bf16.xpose.msra.mxu0 0
    %577 = vmatprep.subr.bf16.mxu0 0
    %578 = vmatpush1.bf16.xpose.msra.mxu0 0
    %579 = vmatprep.subr.bf16.mxu0 0
    %580 = vmatpush1.bf16.xpose.msra.mxu0 0
    %581 = vmatprep.subr.bf16.mxu0 0
    %582 = vmatpush1.bf16.xpose.msra.mxu0 0
    %583 = vmatprep.subr.bf16.mxu0 0
    %584 = vmatpush1.bf16.xpose.msra.mxu0 0
    %585 = vmatprep.subr.bf16.mxu0 0
    %586 = vmatpush1.bf16.xpose.msra.mxu0 0
    %587 = vmatprep.subr.bf16.mxu0 0
    %588 = vmatpush1.bf16.xpose.msra.mxu0 0
    %589 = vmatprep.subr.bf16.mxu0 0
    %590 = vmatpush1.bf16.xpose.msra.mxu0 0
    %591 = vmatprep.subr.bf16.mxu0 0
    %592 = vmatpush1.bf16.xpose.msra.mxu0 0
    %593 = vmatprep.subr.bf16.mxu0 0
    %594 = vmatpush1.bf16.xpose.msra.mxu0 0
    %595 = vmatprep.subr.bf16.mxu0 0
    %596 = vmatpush1.bf16.xpose.msra.mxu0 0
    %597 = vmatprep.subr.bf16.mxu0 0
    %598 = vmatpush1.bf16.xpose.msra.mxu0 0
    %599 = vmatprep.subr.bf16.mxu0 0
    %600 = vmatpush1.bf16.xpose.msra.mxu0 0
    %601 = vmatprep.mubr.bf16.mxu0 0
    %602 = vmatmul.mubr.bf16.gmra.mrb[0].mxu0 %v564
    %v603 = vpop.f32.mrb[0].mxu0
    %v604 = vadd.f32 0.0, %v603
    %v605 = vpop.f32.mrb[0].mxu0
    %v606 = vpop.f32.mrb[0].mxu0
    %v607 = vpop.f32.mrb[0].mxu0
    %608 = vdwg.mxu0
    %609 = vrot.lane.b32.xlu0 %v333, 120
    %v610 = vpop.permute.xlu0 %609
    %611 = vrot.lane.b32.xlu0 %v388, 88
    %v612 = vpop.permute.xlu0 %611
    %v614 = vsel %vm341, %v610, 0
    %v617 = vsel %vm341, %v612, 0
    %619 = vmatprep.subr.bf16.mxu0 0
    %620 = vmatpush1.bf16.xpose.msra.mxu0 %v617
    %621 = vmatprep.subr.bf16.mxu0 0
    %622 = vmatpush1.bf16.xpose.msra.mxu0 0
    %623 = vmatprep.subr.bf16.mxu0 0
    %624 = vmatpush1.bf16.xpose.msra.mxu0 0
    %625 = vmatprep.subr.bf16.mxu0 0
    %626 = vmatpush1.bf16.xpose.msra.mxu0 0
    %627 = vmatprep.subr.bf16.mxu0 0
    %628 = vmatpush1.bf16.xpose.msra.mxu0 0
    %629 = vmatprep.subr.bf16.mxu0 0
    %630 = vmatpush1.bf16.xpose.msra.mxu0 0
    %631 = vmatprep.subr.bf16.mxu0 0
    %632 = vmatpush1.bf16.xpose.msra.mxu0 0
    %633 = vmatprep.subr.bf16.mxu0 0
    %634 = vmatpush1.bf16.xpose.msra.mxu0 0
    %635 = vmatprep.subr.bf16.mxu0 0
    %636 = vmatpush1.bf16.xpose.msra.mxu0 0
    %637 = vmatprep.subr.bf16.mxu0 0
    %638 = vmatpush1.bf16.xpose.msra.mxu0 0
    %639 = vmatprep.subr.bf16.mxu0 0
    %640 = vmatpush1.bf16.xpose.msra.mxu0 0
    %641 = vmatprep.subr.bf16.mxu0 0
    %642 = vmatpush1.bf16.xpose.msra.mxu0 0
    %643 = vmatprep.subr.bf16.mxu0 0
    %644 = vmatpush1.bf16.xpose.msra.mxu0 0
    %645 = vmatprep.subr.bf16.mxu0 0
    %646 = vmatpush1.bf16.xpose.msra.mxu0 0
    %647 = vmatprep.subr.bf16.mxu0 0
    %648 = vmatpush1.bf16.xpose.msra.mxu0 0
    %649 = vmatprep.subr.bf16.mxu0 0
    %650 = vmatpush1.bf16.xpose.msra.mxu0 0
    %651 = vmatprep.mubr.bf16.mxu0 0
    %652 = vmatmul.mubr.bf16.gmra.mrb[0].mxu0 %v614
    %v653 = vpop.f32.mrb[0].mxu0
    %v654 = vadd.f32 0.0, %v653
    %v655 = vpop.f32.mrb[0].mxu0
    %v656 = vpop.f32.mrb[0].mxu0
    %v657 = vpop.f32.mrb[0].mxu0
    %658 = vdwg.mxu0
    %v659 = vsel %vm341, %v604, -inf
    %660 = vmax.xlane.f32.xlu0 %v659
    %v661 = vpop.xlane.xlu0 %660
    %v662 = vsel %vm341, %v654, -inf
    %663 = vmax.xlane.f32.xlu0 %v662
    %v664 = vpop.xlane.xlu0 %663
    %v665 = vsub.f32 %v604, %v661
    %v666 = vsub.f32 %v654, %v664
    %v667 = vmul.f32 %v665, 1.442695
    %v668 = vpow.pop %v667
    %v669 = vmul.f32 %v666, 1.442695
    %v670 = vpow.pop %v669
    %v671 = vsel %vm341, %v668, 0.0
    %672 = vadd.xlane.f32.xlu0 %v671
    %v673 = vpop.xlane.xlu0 %672
    %v674 = vsel %vm341, %v670, 0.0
    %675 = vadd.xlane.f32.xlu0 %v674
    %v676 = vpop.xlane.xlu0 %675
    %v677 = vrcp.pop %v673
    %v678 = vrcp.pop %v676
    %v679 = vmul.f32 %v668, %v677
    %v680 = vmul.f32 %v670, %v678
    %v681 = vpack.c.bf16 %v679, %v679
    %v682 = vpack.c.bf16 %v680, %v680
    %683 = vrot.lane.b32.xlu0 %v338, 56
    %v684 = vpop.permute.xlu0 %683
    %v686 = vsel %vm341, %v681, 0
    %v689 = vsel %vm466, %v684, 0
    %691 = vmatprep.subr.bf16.mxu0 0
    %692 = vmatpush1.bf16.msra.mxu0 %v689
    %693 = vmatprep.subr.bf16.mxu0 0
    %694 = vmatpush1.bf16.msra.mxu0 0
    %695 = vmatprep.subr.bf16.mxu0 0
    %696 = vmatpush1.bf16.msra.mxu0 0
    %697 = vmatprep.subr.bf16.mxu0 0
    %698 = vmatpush1.bf16.msra.mxu0 0
    %699 = vmatprep.subr.bf16.mxu0 0
    %700 = vmatpush1.bf16.msra.mxu0 0
    %701 = vmatprep.subr.bf16.mxu0 0
    %702 = vmatpush1.bf16.msra.mxu0 0
    %703 = vmatprep.subr.bf16.mxu0 0
    %704 = vmatpush1.bf16.msra.mxu0 0
    %705 = vmatprep.subr.bf16.mxu0 0
    %706 = vmatpush1.bf16.msra.mxu0 0
    %707 = vmatprep.subr.bf16.mxu0 0
    %708 = vmatpush1.bf16.msra.mxu0 0
    %709 = vmatprep.subr.bf16.mxu0 0
    %710 = vmatpush1.bf16.msra.mxu0 0
    %711 = vmatprep.subr.bf16.mxu0 0
    %712 = vmatpush1.bf16.msra.mxu0 0
    %713 = vmatprep.subr.bf16.mxu0 0
    %714 = vmatpush1.bf16.msra.mxu0 0
    %715 = vmatprep.subr.bf16.mxu0 0
    %716 = vmatpush1.bf16.msra.mxu0 0
    %717 = vmatprep.subr.bf16.mxu0 0
    %718 = vmatpush1.bf16.msra.mxu0 0
    %719 = vmatprep.subr.bf16.mxu0 0
    %720 = vmatpush1.bf16.msra.mxu0 0
    %721 = vmatprep.subr.bf16.mxu0 0
    %722 = vmatpush1.bf16.msra.mxu0 0
    %723 = vmatprep.mubr.bf16.mxu0 0
    %724 = vmatmul.mubr.bf16.gmra.mrb[0].mxu0 %v686
    %v725 = vpop.f32.mrb[0].mxu0
    %v726 = vadd.f32 0.0, %v725
    %v727 = vpop.f32.mrb[0].mxu0
    %v728 = vpop.f32.mrb[0].mxu0
    %v729 = vpop.f32.mrb[0].mxu0
    %730 = vdwg.mxu0
    %731 = vrot.lane.b32.xlu0 %v388, 56
    %v732 = vpop.permute.xlu0 %731
    %v734 = vsel %vm341, %v682, 0
    %v737 = vsel %vm466, %v732, 0
    %739 = vmatprep.subr.bf16.mxu0 0
    %740 = vmatpush1.bf16.msra.mxu0 %v737
    %741 = vmatprep.subr.bf16.mxu0 0
    %742 = vmatpush1.bf16.msra.mxu0 0
    %743 = vmatprep.subr.bf16.mxu0 0
    %744 = vmatpush1.bf16.msra.mxu0 0
    %745 = vmatprep.subr.bf16.mxu0 0
    %746 = vmatpush1.bf16.msra.mxu0 0
    %747 = vmatprep.subr.bf16.mxu0 0
    %748 = vmatpush1.bf16.msra.mxu0 0
    %749 = vmatprep.subr.bf16.mxu0 0
    %750 = vmatpush1.bf16.msra.mxu0 0
    %751 = vmatprep.subr.bf16.mxu0 0
    %752 = vmatpush1.bf16.msra.mxu0 0
    %753 = vmatprep.subr.bf16.mxu0 0
    %754 = vmatpush1.bf16.msra.mxu0 0
    %755 = vmatprep.subr.bf16.mxu0 0
    %756 = vmatpush1.bf16.msra.mxu0 0
    %757 = vmatprep.subr.bf16.mxu0 0
    %758 = vmatpush1.bf16.msra.mxu0 0
    %759 = vmatprep.subr.bf16.mxu0 0
    %760 = vmatpush1.bf16.msra.mxu0 0
    %761 = vmatprep.subr.bf16.mxu0 0
    %762 = vmatpush1.bf16.msra.mxu0 0
    %763 = vmatprep.subr.bf16.mxu0 0
    %764 = vmatpush1.bf16.msra.mxu0 0
    %765 = vmatprep.subr.bf16.mxu0 0
    %766 = vmatpush1.bf16.msra.mxu0 0
    %767 = vmatprep.subr.bf16.mxu0 0
    %768 = vmatpush1.bf16.msra.mxu0 0
    %769 = vmatprep.subr.bf16.mxu0 0
    %770 = vmatpush1.bf16.msra.mxu0 0
    %771 = vmatprep.mubr.bf16.mxu0 0
    %772 = vmatmul.mubr.bf16.gmra.mrb[0].mxu0 %v734
    %v773 = vpop.f32.mrb[0].mxu0
    %v774 = vadd.f32 0.0, %v773
    %v775 = vpop.f32.mrb[0].mxu0
    %v776 = vpop.f32.mrb[0].mxu0
    %v777 = vpop.f32.mrb[0].mxu0
    %778 = vdwg.mxu0
    %v779 = vpack.c.bf16 %v774, %v726
    %v781 = vsel %vm341, %v779, 0
    %v784 = vsel %vm466, %v323, 0
    %786 = vmatprep.subr.bf16.mxu0 0
    %787 = vmatpush1.bf16.msra.mxu0 %v784
    %788 = vmatprep.subr.bf16.mxu0 0
    %789 = vmatpush1.bf16.msra.mxu0 0
    %790 = vmatprep.subr.bf16.mxu0 0
    %791 = vmatpush1.bf16.msra.mxu0 0
    %792 = vmatprep.subr.bf16.mxu0 0
    %793 = vmatpush1.bf16.msra.mxu0 0
    %794 = vmatprep.subr.bf16.mxu0 0
    %795 = vmatpush1.bf16.msra.mxu0 0
    %796 = vmatprep.subr.bf16.mxu0 0
    %797 = vmatpush1.bf16.msra.mxu0 0
    %798 = vmatprep.subr.bf16.mxu0 0
    %799 = vmatpush1.bf16.msra.mxu0 0
    %800 = vmatprep.subr.bf16.mxu0 0
    %801 = vmatpush1.bf16.msra.mxu0 0
    %802 = vmatprep.subr.bf16.mxu0 0
    %803 = vmatpush1.bf16.msra.mxu0 0
    %804 = vmatprep.subr.bf16.mxu0 0
    %805 = vmatpush1.bf16.msra.mxu0 0
    %806 = vmatprep.subr.bf16.mxu0 0
    %807 = vmatpush1.bf16.msra.mxu0 0
    %808 = vmatprep.subr.bf16.mxu0 0
    %809 = vmatpush1.bf16.msra.mxu0 0
    %810 = vmatprep.subr.bf16.mxu0 0
    %811 = vmatpush1.bf16.msra.mxu0 0
    %812 = vmatprep.subr.bf16.mxu0 0
    %813 = vmatpush1.bf16.msra.mxu0 0
    %814 = vmatprep.subr.bf16.mxu0 0
    %815 = vmatpush1.bf16.msra.mxu0 0
    %816 = vmatprep.subr.bf16.mxu0 0
    %817 = vmatpush1.bf16.msra.mxu0 0
    %818 = vmatprep.mubr.bf16.mxu0 0
    %819 = vmatmul.mubr.bf16.gmra.mrb[0].mxu0 %v781
    %v820 = vpop.f32.mrb[0].mxu0
    %v821 = vadd.f32 0.0, %v820
    %v822 = vpop.f32.mrb[0].mxu0
    %v823 = vpop.f32.mrb[0].mxu0
    %v824 = vadd.f32 0.0, %v823
    %v825 = vpop.f32.mrb[0].mxu0
    %826 = vdwg.mxu0
    %v828 = vsel %vm341, %v558, 0
    %v831 = vsel %vm466, %v322, 0
    %833 = vmatprep.subr.bf16.mxu0 0
    %834 = vmatpush1.bf16.msra.mxu0 %v831
    %835 = vmatprep.subr.bf16.mxu0 0
    %836 = vmatpush1.bf16.msra.mxu0 0
    %837 = vmatprep.subr.bf16.mxu0 0
    %838 = vmatpush1.bf16.msra.mxu0 0
    %839 = vmatprep.subr.bf16.mxu0 0
    %840 = vmatpush1.bf16.msra.mxu0 0
    %841 = vmatprep.subr.bf16.mxu0 0
    %842 = vmatpush1.bf16.msra.mxu0 0
    %843 = vmatprep.subr.bf16.mxu0 0
    %844 = vmatpush1.bf16.msra.mxu0 0
    %845 = vmatprep.subr.bf16.mxu0 0
    %846 = vmatpush1.bf16.msra.mxu0 0
    %847 = vmatprep.subr.bf16.mxu0 0
    %848 = vmatpush1.bf16.msra.mxu0 0
    %849 = vmatprep.subr.bf16.mxu0 0
    %850 = vmatpush1.bf16.msra.mxu0 0
    %851 = vmatprep.subr.bf16.mxu0 0
    %852 = vmatpush1.bf16.msra.mxu0 0
    %853 = vmatprep.subr.bf16.mxu0 0
    %854 = vmatpush1.bf16.msra.mxu0 0
    %855 = vmatprep.subr.bf16.mxu0 0
    %856 = vmatpush1.bf16.msra.mxu0 0
    %857 = vmatprep.subr.bf16.mxu0 0
    %858 = vmatpush1.bf16.msra.mxu0 0
    %859 = vmatprep.subr.bf16.mxu0 0
    %860 = vmatpush1.bf16.msra.mxu0 0
    %861 = vmatprep.subr.bf16.mxu0 0
    %862 = vmatpush1.bf16.msra.mxu0 0
    %863 = vmatprep.subr.bf16.mxu0 0
    %864 = vmatpush1.bf16.msra.mxu0 0
    %865 = vmatprep.mubr.bf16.mxu0 0
    %866 = vmatmul.mubr.bf16.gmra.mrb[0].mxu0 %v828
    %v867 = vpop.f32.mrb[0].mxu0
    %v868 = vadd.f32 %v821, %v867
    %v869 = vpop.f32.mrb[0].mxu0
    %v870 = vpop.f32.mrb[0].mxu0
    %v871 = vadd.f32 %v824, %v870
    %v872 = vpop.f32.mrb[0].mxu0
    %873 = vdwg.mxu0
    %874 = vrot.lane.b32.xlu0 %v332, 112
    %v875 = vpop.permute.xlu0 %874
    %876 = vrot.lane.b32.xlu0 %v338, 80
    %v877 = vpop.permute.xlu0 %876
    %v879 = vsel %vm341, %v875, 0
    %v882 = vsel %vm341, %v877, 0
    %884 = vmatprep.subr.bf16.mxu0 0
    %885 = vmatpush1.bf16.xpose.msra.mxu0 %v882
    %886 = vmatprep.subr.bf16.mxu0 0
    %887 = vmatpush1.bf16.xpose.msra.mxu0 0
    %888 = vmatprep.subr.bf16.mxu0 0
    %889 = vmatpush1.bf16.xpose.msra.mxu0 0
    %890 = vmatprep.subr.bf16.mxu0 0
    %891 = vmatpush1.bf16.xpose.msra.mxu0 0
    %892 = vmatprep.subr.bf16.mxu0 0
    %893 = vmatpush1.bf16.xpose.msra.mxu0 0
    %894 = vmatprep.subr.bf16.mxu0 0
    %895 = vmatpush1.bf16.xpose.msra.mxu0 0
    %896 = vmatprep.subr.bf16.mxu0 0
    %897 = vmatpush1.bf16.xpose.msra.mxu0 0
    %898 = vmatprep.subr.bf16.mxu0 0
    %899 = vmatpush1.bf16.xpose.msra.mxu0 0
    %900 = vmatprep.subr.bf16.mxu0 0
    %901 = vmatpush1.bf16.xpose.msra.mxu0 0
    %902 = vmatprep.subr.bf16.mxu0 0
    %903 = vmatpush1.bf16.xpose.msra.mxu0 0
    %904 = vmatprep.subr.bf16.mxu0 0
    %905 = vmatpush1.bf16.xpose.msra.mxu0 0
    %906 = vmatprep.subr.bf16.mxu0 0
    %907 = vmatpush1.bf16.xpose.msra.mxu0 0
    %908 = vmatprep.subr.bf16.mxu0 0
    %909 = vmatpush1.bf16.xpose.msra.mxu0 0
    %910 = vmatprep.subr.bf16.mxu0 0
    %911 = vmatpush1.bf16.xpose.msra.mxu0 0
    %912 = vmatprep.subr.bf16.mxu0 0
    %913 = vmatpush1.bf16.xpose.msra.mxu0 0
    %914 = vmatprep.subr.bf16.mxu0 0
    %915 = vmatpush1.bf16.xpose.msra.mxu0 0
    %916 = vmatprep.mubr.bf16.mxu0 0
    %917 = vmatmul.mubr.bf16.gmra.mrb[0].mxu0 %v879
    %v918 = vpop.f32.mrb[0].mxu0
    %v919 = vadd.f32 0.0, %v918
    %v920 = vpop.f32.mrb[0].mxu0
    %v921 = vpop.f32.mrb[0].mxu0
    %v922 = vpop.f32.mrb[0].mxu0
    %923 = vdwg.mxu0
    %924 = vrot.lane.b32.xlu0 %v333, 112
    %v925 = vpop.permute.xlu0 %924
    %926 = vrot.lane.b32.xlu0 %v388, 80
    %v927 = vpop.permute.xlu0 %926
    %v929 = vsel %vm341, %v925, 0
    %v932 = vsel %vm341, %v927, 0
    %934 = vmatprep.subr.bf16.mxu0 0
    %935 = vmatpush1.bf16.xpose.msra.mxu0 %v932
    %936 = vmatprep.subr.bf16.mxu0 0
    %937 = vmatpush1.bf16.xpose.msra.mxu0 0
    %938 = vmatprep.subr.bf16.mxu0 0
    %939 = vmatpush1.bf16.xpose.msra.mxu0 0
    %940 = vmatprep.subr.bf16.mxu0 0
    %941 = vmatpush1.bf16.xpose.msra.mxu0 0
    %942 = vmatprep.subr.bf16.mxu0 0
    %943 = vmatpush1.bf16.xpose.msra.mxu0 0
    %944 = vmatprep.subr.bf16.mxu0 0
    %945 = vmatpush1.bf16.xpose.msra.mxu0 0
    %946 = vmatprep.subr.bf16.mxu0 0
    %947 = vmatpush1.bf16.xpose.msra.mxu0 0
    %948 = vmatprep.subr.bf16.mxu0 0
    %949 = vmatpush1.bf16.xpose.msra.mxu0 0
    %950 = vmatprep.subr.bf16.mxu0 0
    %951 = vmatpush1.bf16.xpose.msra.mxu0 0
    %952 = vmatprep.subr.bf16.mxu0 0
    %953 = vmatpush1.bf16.xpose.msra.mxu0 0
    %954 = vmatprep.subr.bf16.mxu0 0
    %955 = vmatpush1.bf16.xpose.msra.mxu0 0
    %956 = vmatprep.subr.bf16.mxu0 0
    %957 = vmatpush1.bf16.xpose.msra.mxu0 0
    %958 = vmatprep.subr.bf16.mxu0 0
    %959 = vmatpush1.bf16.xpose.msra.mxu0 0
    %960 = vmatprep.subr.bf16.mxu0 0
    %961 = vmatpush1.bf16.xpose.msra.mxu0 0
    %962 = vmatprep.subr.bf16.mxu0 0
    %963 = vmatpush1.bf16.xpose.msra.mxu0 0
    %964 = vmatprep.subr.bf16.mxu0 0
    %965 = vmatpush1.bf16.xpose.msra.mxu0 0
    %966 = vmatprep.mubr.bf16.mxu0 0
    %967 = vmatmul.mubr.bf16.gmra.mrb[0].mxu0 %v929
    %v968 = vpop.f32.mrb[0].mxu0
    %v969 = vadd.f32 0.0, %v968
    %v970 = vpop.f32.mrb[0].mxu0
    %v971 = vpop.f32.mrb[0].mxu0
    %v972 = vpop.f32.mrb[0].mxu0
    %973 = vdwg.mxu0
    %v974 = vsel %vm341, %v919, -inf
    %975 = vmax.xlane.f32.xlu0 %v974
    %v976 = vpop.xlane.xlu0 %975
    %v977 = vsel %vm341, %v969, -inf
    %978 = vmax.xlane.f32.xlu0 %v977
    %v979 = vpop.xlane.xlu0 %978
    %v980 = vsub.f32 %v919, %v976
    %v981 = vsub.f32 %v969, %v979
    %v982 = vmul.f32 %v980, 1.442695
    %v983 = vpow.pop %v982
    %v984 = vmul.f32 %v981, 1.442695
    %v985 = vpow.pop %v984
    %v986 = vsel %vm341, %v983, 0.0
    %987 = vadd.xlane.f32.xlu0 %v986
    %v988 = vpop.xlane.xlu0 %987
    %v989 = vsel %vm341, %v985, 0.0
    %990 = vadd.xlane.f32.xlu0 %v989
    %v991 = vpop.xlane.xlu0 %990
    %v992 = vrcp.pop %v988
    %v993 = vrcp.pop %v991
    %v994 = vmul.f32 %v983, %v992
    %v995 = vmul.f32 %v985, %v993
    %v996 = vpack.c.bf16 %v994, %v994
    %v997 = vpack.c.bf16 %v995, %v995
    %998 = vrot.lane.b32.xlu0 %v338, 48
    %v999 = vpop.permute.xlu0 %998
    %v1001 = vsel %vm341, %v996, 0
    %v1004 = vsel %vm466, %v999, 0
    %1006 = vmatprep.subr.bf16.mxu0 0
    %1007 = vmatpush1.bf16.msra.mxu0 %v1004
    %1008 = vmatprep.subr.bf16.mxu0 0
    %1009 = vmatpush1.bf16.msra.mxu0 0
    %1010 = vmatprep.subr.bf16.mxu0 0
    %1011 = vmatpush1.bf16.msra.mxu0 0
    %1012 = vmatprep.subr.bf16.mxu0 0
    %1013 = vmatpush1.bf16.msra.mxu0 0
    %1014 = vmatprep.subr.bf16.mxu0 0
    %1015 = vmatpush1.bf16.msra.mxu0 0
    %1016 = vmatprep.subr.bf16.mxu0 0
    %1017 = vmatpush1.bf16.msra.mxu0 0
    %1018 = vmatprep.subr.bf16.mxu0 0
    %1019 = vmatpush1.bf16.msra.mxu0 0
    %1020 = vmatprep.subr.bf16.mxu0 0
    %1021 = vmatpush1.bf16.msra.mxu0 0
    %1022 = vmatprep.subr.bf16.mxu0 0
    %1023 = vmatpush1.bf16.msra.mxu0 0
    %1024 = vmatprep.subr.bf16.mxu0 0
    %1025 = vmatpush1.bf16.msra.mxu0 0
    %1026 = vmatprep.subr.bf16.mxu0 0
    %1027 = vmatpush1.bf16.msra.mxu0 0
    %1028 = vmatprep.subr.bf16.mxu0 0
    %1029 = vmatpush1.bf16.msra.mxu0 0
    %1030 = vmatprep.subr.bf16.mxu0 0
    %1031 = vmatpush1.bf16.msra.mxu0 0
    %1032 = vmatprep.subr.bf16.mxu0 0
    %1033 = vmatpush1.bf16.msra.mxu0 0
    %1034 = vmatprep.subr.bf16.mxu0 0
    %1035 = vmatpush1.bf16.msra.mxu0 0
    %1036 = vmatprep.subr.bf16.mxu0 0
    %1037 = vmatpush1.bf16.msra.mxu0 0
    %1038 = vmatprep.mubr.bf16.mxu0 0
    %1039 = vmatmul.mubr.bf16.gmra.mrb[0].mxu0 %v1001
    %v1040 = vpop.f32.mrb[0].mxu0
    %v1041 = vadd.f32 0.0, %v1040
    %v1042 = vpop.f32.mrb[0].mxu0
    %v1043 = vpop.f32.mrb[0].mxu0
    %v1044 = vpop.f32.mrb[0].mxu0
    %1045 = vdwg.mxu0
    %1046 = vrot.lane.b32.xlu0 %v388, 48
    %v1047 = vpop.permute.xlu0 %1046
    %v1049 = vsel %vm341, %v997, 0
    %v1052 = vsel %vm466, %v1047, 0
    %1054 = vmatprep.subr.bf16.mxu0 0
    %1055 = vmatpush1.bf16.msra.mxu0 %v1052
    %1056 = vmatprep.subr.bf16.mxu0 0
    %1057 = vmatpush1.bf16.msra.mxu0 0
    %1058 = vmatprep.subr.bf16.mxu0 0
    %1059 = vmatpush1.bf16.msra.mxu0 0
    %1060 = vmatprep.subr.bf16.mxu0 0
    %1061 = vmatpush1.bf16.msra.mxu0 0
    %1062 = vmatprep.subr.bf16.mxu0 0
    %1063 = vmatpush1.bf16.msra.mxu0 0
    %1064 = vmatprep.subr.bf16.mxu0 0
    %1065 = vmatpush1.bf16.msra.mxu0 0
    %1066 = vmatprep.subr.bf16.mxu0 0
    %1067 = vmatpush1.bf16.msra.mxu0 0
    %1068 = vmatprep.subr.bf16.mxu0 0
    %1069 = vmatpush1.bf16.msra.mxu0 0
    %1070 = vmatprep.subr.bf16.mxu0 0
    %1071 = vmatpush1.bf16.msra.mxu0 0
    %1072 = vmatprep.subr.bf16.mxu0 0
    %1073 = vmatpush1.bf16.msra.mxu0 0
    %1074 = vmatprep.subr.bf16.mxu0 0
    %1075 = vmatpush1.bf16.msra.mxu0 0
    %1076 = vmatprep.subr.bf16.mxu0 0
    %1077 = vmatpush1.bf16.msra.mxu0 0
    %1078 = vmatprep.subr.bf16.mxu0 0
    %1079 = vmatpush1.bf16.msra.mxu0 0
    %1080 = vmatprep.subr.bf16.mxu0 0
    %1081 = vmatpush1.bf16.msra.mxu0 0
    %1082 = vmatprep.subr.bf16.mxu0 0
    %1083 = vmatpush1.bf16.msra.mxu0 0
    %1084 = vmatprep.subr.bf16.mxu0 0
    %1085 = vmatpush1.bf16.msra.mxu0 0
    %1086 = vmatprep.mubr.bf16.mxu0 0
    %1087 = vmatmul.mubr.bf16.gmra.mrb[0].mxu0 %v1049
    %v1088 = vpop.f32.mrb[0].mxu0
    %v1089 = vadd.f32 0.0, %v1088
    %v1090 = vpop.f32.mrb[0].mxu0
    %v1091 = vpop.f32.mrb[0].mxu0
    %v1092 = vpop.f32.mrb[0].mxu0
    %1093 = vdwg.mxu0
    %v1094 = vpack.c.bf16 %v1089, %v1041
    %v1096 = vsel %vm341, %v1094, 0
    %v1099 = vsel %vm466, %v324, 0
    %1101 = vmatprep.subr.bf16.mxu0 0
    %1102 = vmatpush1.bf16.msra.mxu0 %v1099
    %1103 = vmatprep.subr.bf16.mxu0 0
    %1104 = vmatpush1.bf16.msra.mxu0 0
    %1105 = vmatprep.subr.bf16.mxu0 0
    %1106 = vmatpush1.bf16.msra.mxu0 0
    %1107 = vmatprep.subr.bf16.mxu0 0
    %1108 = vmatpush1.bf16.msra.mxu0 0
    %1109 = vmatprep.subr.bf16.mxu0 0
    %1110 = vmatpush1.bf16.msra.mxu0 0
    %1111 = vmatprep.subr.bf16.mxu0 0
    %1112 = vmatpush1.bf16.msra.mxu0 0
    %1113 = vmatprep.subr.bf16.mxu0 0
    %1114 = vmatpush1.bf16.msra.mxu0 0
    %1115 = vmatprep.subr.bf16.mxu0 0
    %1116 = vmatpush1.bf16.msra.mxu0 0
    %1117 = vmatprep.subr.bf16.mxu0 0
    %1118 = vmatpush1.bf16.msra.mxu0 0
    %1119 = vmatprep.subr.bf16.mxu0 0
    %1120 = vmatpush1.bf16.msra.mxu0 0
    %1121 = vmatprep.subr.bf16.mxu0 0
    %1122 = vmatpush1.bf16.msra.mxu0 0
    %1123 = vmatprep.subr.bf16.mxu0 0
    %1124 = vmatpush1.bf16.msra.mxu0 0
    %1125 = vmatprep.subr.bf16.mxu0 0
    %1126 = vmatpush1.bf16.msra.mxu0 0
    %1127 = vmatprep.subr.bf16.mxu0 0
    %1128 = vmatpush1.bf16.msra.mxu0 0
    %1129 = vmatprep.subr.bf16.mxu0 0
    %1130 = vmatpush1.bf16.msra.mxu0 0
    %1131 = vmatprep.subr.bf16.mxu0 0
    %1132 = vmatpush1.bf16.msra.mxu0 0
    %1133 = vmatprep.mubr.bf16.mxu0 0
    %1134 = vmatmul.mubr.bf16.gmra.mrb[0].mxu0 %v1096
    %v1135 = vpop.f32.mrb[0].mxu0
    %v1136 = vadd.f32 0.0, %v1135
    %v1137 = vpop.f32.mrb[0].mxu0
    %v1138 = vpop.f32.mrb[0].mxu0
    %v1139 = vadd.f32 0.0, %v1138
    %v1140 = vpop.f32.mrb[0].mxu0
    %1141 = vdwg.mxu0
    %v1142 = vadd.f32 %v868, %v1136
    %v1143 = vadd.f32 %v871, %v1139
    %1144 = vrot.lane.b32.xlu0 %v332, 104
    %v1145 = vpop.permute.xlu0 %1144
    %1146 = vrot.lane.b32.xlu0 %v338, 72
    %v1147 = vpop.permute.xlu0 %1146
    %v1149 = vsel %vm341, %v1145, 0
    %v1152 = vsel %vm341, %v1147, 0
    %1154 = vmatprep.subr.bf16.mxu0 0
    %1155 = vmatpush1.bf16.xpose.msra.mxu0 %v1152
    %1156 = vmatprep.subr.bf16.mxu0 0
    %1157 = vmatpush1.bf16.xpose.msra.mxu0 0
    %1158 = vmatprep.subr.bf16.mxu0 0
    %1159 = vmatpush1.bf16.xpose.msra.mxu0 0
    %1160 = vmatprep.subr.bf16.mxu0 0
    %1161 = vmatpush1.bf16.xpose.msra.mxu0 0
    %1162 = vmatprep.subr.bf16.mxu0 0
    %1163 = vmatpush1.bf16.xpose.msra.mxu0 0
    %1164 = vmatprep.subr.bf16.mxu0 0
    %1165 = vmatpush1.bf16.xpose.msra.mxu0 0
    %1166 = vmatprep.subr.bf16.mxu0 0
    %1167 = vmatpush1.bf16.xpose.msra.mxu0 0
    %1168 = vmatprep.subr.bf16.mxu0 0
    %1169 = vmatpush1.bf16.xpose.msra.mxu0 0
    %1170 = vmatprep.subr.bf16.mxu0 0
    %1171 = vmatpush1.bf16.xpose.msra.mxu0 0
    %1172 = vmatprep.subr.bf16.mxu0 0
    %1173 = vmatpush1.bf16.xpose.msra.mxu0 0
    %1174 = vmatprep.subr.bf16.mxu0 0
    %1175 = vmatpush1.bf16.xpose.msra.mxu0 0
    %1176 = vmatprep.subr.bf16.mxu0 0
    %1177 = vmatpush1.bf16.xpose.msra.mxu0 0
    %1178 = vmatprep.subr.bf16.mxu0 0
    %1179 = vmatpush1.bf16.xpose.msra.mxu0 0
    %1180 = vmatprep.subr.bf16.mxu0 0
    %1181 = vmatpush1.bf16.xpose.msra.mxu0 0
    %1182 = vmatprep.subr.bf16.mxu0 0
    %1183 = vmatpush1.bf16.xpose.msra.mxu0 0
    %1184 = vmatprep.subr.bf16.mxu0 0
    %1185 = vmatpush1.bf16.xpose.msra.mxu0 0
    %1186 = vmatprep.mubr.bf16.mxu0 0
    %1187 = vmatmul.mubr.bf16.gmra.mrb[0].mxu0 %v1149
    %v1188 = vpop.f32.mrb[0].mxu0
    %v1189 = vadd.f32 0.0, %v1188
    %v1190 = vpop.f32.mrb[0].mxu0
    %v1191 = vpop.f32.mrb[0].mxu0
    %v1192 = vpop.f32.mrb[0].mxu0
    %1193 = vdwg.mxu0
    %1194 = vrot.lane.b32.xlu0 %v333, 104
    %v1195 = vpop.permute.xlu0 %1194
    %1196 = vrot.lane.b32.xlu0 %v388, 72
    %v1197 = vpop.permute.xlu0 %1196
    %v1199 = vsel %vm341, %v1195, 0
    %v1202 = vsel %vm341, %v1197, 0
    %1204 = vmatprep.subr.bf16.mxu0 0
    %1205 = vmatpush1.bf16.xpose.msra.mxu0 %v1202
    %1206 = vmatprep.subr.bf16.mxu0 0
    %1207 = vmatpush1.bf16.xpose.msra.mxu0 0
    %1208 = vmatprep.subr.bf16.mxu0 0
    %1209 = vmatpush1.bf16.xpose.msra.mxu0 0
    %1210 = vmatprep.subr.bf16.mxu0 0
    %1211 = vmatpush1.bf16.xpose.msra.mxu0 0
    %1212 = vmatprep.subr.bf16.mxu0 0
    %1213 = vmatpush1.bf16.xpose.msra.mxu0 0
    %1214 = vmatprep.subr.bf16.mxu0 0
    %1215 = vmatpush1.bf16.xpose.msra.mxu0 0
    %1216 = vmatprep.subr.bf16.mxu0 0
    %1217 = vmatpush1.bf16.xpose.msra.mxu0 0
    %1218 = vmatprep.subr.bf16.mxu0 0
    %1219 = vmatpush1.bf16.xpose.msra.mxu0 0
    %1220 = vmatprep.subr.bf16.mxu0 0
    %1221 = vmatpush1.bf16.xpose.msra.mxu0 0
    %1222 = vmatprep.subr.bf16.mxu0 0
    %1223 = vmatpush1.bf16.xpose.msra.mxu0 0
    %1224 = vmatprep.subr.bf16.mxu0 0
    %1225 = vmatpush1.bf16.xpose.msra.mxu0 0
    %1226 = vmatprep.subr.bf16.mxu0 0
    %1227 = vmatpush1.bf16.xpose.msra.mxu0 0
    %1228 = vmatprep.subr.bf16.mxu0 0
    %1229 = vmatpush1.bf16.xpose.msra.mxu0 0
    %1230 = vmatprep.subr.bf16.mxu0 0
    %1231 = vmatpush1.bf16.xpose.msra.mxu0 0
    %1232 = vmatprep.subr.bf16.mxu0 0
    %1233 = vmatpush1.bf16.xpose.msra.mxu0 0
    %1234 = vmatprep.subr.bf16.mxu0 0
    %1235 = vmatpush1.bf16.xpose.msra.mxu0 0
    %1236 = vmatprep.mubr.bf16.mxu0 0
    %1237 = vmatmul.mubr.bf16.gmra.mrb[0].mxu0 %v1199
    %v1238 = vpop.f32.mrb[0].mxu0
    %v1239 = vadd.f32 0.0, %v1238
    %v1240 = vpop.f32.mrb[0].mxu0
    %v1241 = vpop.f32.mrb[0].mxu0
    %v1242 = vpop.f32.mrb[0].mxu0
    %1243 = vdwg.mxu0
    %v1244 = vsel %vm341, %v1189, -inf
    %1245 = vmax.xlane.f32.xlu0 %v1244
    %v1246 = vpop.xlane.xlu0 %1245
    %v1247 = vsel %vm341, %v1239, -inf
    %1248 = vmax.xlane.f32.xlu0 %v1247
    %v1249 = vpop.xlane.xlu0 %1248
    %v1250 = vsub.f32 %v1189, %v1246
    %v1251 = vsub.f32 %v1239, %v1249
    %v1252 = vmul.f32 %v1250, 1.442695
    %v1253 = vpow.pop %v1252
    %v1254 = vmul.f32 %v1251, 1.442695
    %v1255 = vpow.pop %v1254
    %v1256 = vsel %vm341, %v1253, 0.0
    %1257 = vadd.xlane.f32.xlu0 %v1256
    %v1258 = vpop.xlane.xlu0 %1257
    %v1259 = vsel %vm341, %v1255, 0.0
    %1260 = vadd.xlane.f32.xlu0 %v1259
    %v1261 = vpop.xlane.xlu0 %1260
    %v1262 = vrcp.pop %v1258
    %v1263 = vrcp.pop %v1261
    %v1264 = vmul.f32 %v1253, %v1262
    %v1265 = vmul.f32 %v1255, %v1263
    %v1266 = vpack.c.bf16 %v1264, %v1264
    %v1267 = vpack.c.bf16 %v1265, %v1265
    %1268 = vrot.lane.b32.xlu0 %v338, 40
    %v1269 = vpop.permute.xlu0 %1268
    %v1271 = vsel %vm341, %v1266, 0
    %v1274 = vsel %vm466, %v1269, 0
    %1276 = vmatprep.subr.bf16.mxu0 0
    %1277 = vmatpush1.bf16.msra.mxu0 %v1274
    %1278 = vmatprep.subr.bf16.mxu0 0
    %1279 = vmatpush1.bf16.msra.mxu0 0
    %1280 = vmatprep.subr.bf16.mxu0 0
    %1281 = vmatpush1.bf16.msra.mxu0 0
    %1282 = vmatprep.subr.bf16.mxu0 0
    %1283 = vmatpush1.bf16.msra.mxu0 0
    %1284 = vmatprep.subr.bf16.mxu0 0
    %1285 = vmatpush1.bf16.msra.mxu0 0
    %1286 = vmatprep.subr.bf16.mxu0 0
    %1287 = vmatpush1.bf16.msra.mxu0 0
    %1288 = vmatprep.subr.bf16.mxu0 0
    %1289 = vmatpush1.bf16.msra.mxu0 0
    %1290 = vmatprep.subr.bf16.mxu0 0
    %1291 = vmatpush1.bf16.msra.mxu0 0
    %1292 = vmatprep.subr.bf16.mxu0 0
    %1293 = vmatpush1.bf16.msra.mxu0 0
    %1294 = vmatprep.subr.bf16.mxu0 0
    %1295 = vmatpush1.bf16.msra.mxu0 0
    %1296 = vmatprep.subr.bf16.mxu0 0
    %1297 = vmatpush1.bf16.msra.mxu0 0
    %1298 = vmatprep.subr.bf16.mxu0 0
    %1299 = vmatpush1.bf16.msra.mxu0 0
    %1300 = vmatprep.subr.bf16.mxu0 0
    %1301 = vmatpush1.bf16.msra.mxu0 0
    %1302 = vmatprep.subr.bf16.mxu0 0
    %1303 = vmatpush1.bf16.msra.mxu0 0
    %1304 = vmatprep.subr.bf16.mxu0 0
    %1305 = vmatpush1.bf16.msra.mxu0 0
    %1306 = vmatprep.subr.bf16.mxu0 0
    %1307 = vmatpush1.bf16.msra.mxu0 0
    %1308 = vmatprep.mubr.bf16.mxu0 0
    %1309 = vmatmul.mubr.bf16.gmra.mrb[0].mxu0 %v1271
    %v1310 = vpop.f32.mrb[0].mxu0
    %v1311 = vadd.f32 0.0, %v1310
    %v1312 = vpop.f32.mrb[0].mxu0
    %v1313 = vpop.f32.mrb[0].mxu0
    %v1314 = vpop.f32.mrb[0].mxu0
    %1315 = vdwg.mxu0
    %1316 = vrot.lane.b32.xlu0 %v388, 40
    %v1317 = vpop.permute.xlu0 %1316
    %v1319 = vsel %vm341, %v1267, 0
    %v1322 = vsel %vm466, %v1317, 0
    %1324 = vmatprep.subr.bf16.mxu0 0
    %1325 = vmatpush1.bf16.msra.mxu0 %v1322
    %1326 = vmatprep.subr.bf16.mxu0 0
    %1327 = vmatpush1.bf16.msra.mxu0 0
    %1328 = vmatprep.subr.bf16.mxu0 0
    %1329 = vmatpush1.bf16.msra.mxu0 0
    %1330 = vmatprep.subr.bf16.mxu0 0
    %1331 = vmatpush1.bf16.msra.mxu0 0
    %1332 = vmatprep.subr.bf16.mxu0 0
    %1333 = vmatpush1.bf16.msra.mxu0 0
    %1334 = vmatprep.subr.bf16.mxu0 0
    %1335 = vmatpush1.bf16.msra.mxu0 0
    %1336 = vmatprep.subr.bf16.mxu0 0
    %1337 = vmatpush1.bf16.msra.mxu0 0
    %1338 = vmatprep.subr.bf16.mxu0 0
    %1339 = vmatpush1.bf16.msra.mxu0 0
    %1340 = vmatprep.subr.bf16.mxu0 0
    %1341 = vmatpush1.bf16.msra.mxu0 0
    %1342 = vmatprep.subr.bf16.mxu0 0
    %1343 = vmatpush1.bf16.msra.mxu0 0
    %1344 = vmatprep.subr.bf16.mxu0 0
    %1345 = vmatpush1.bf16.msra.mxu0 0
    %1346 = vmatprep.subr.bf16.mxu0 0
    %1347 = vmatpush1.bf16.msra.mxu0 0
    %1348 = vmatprep.subr.bf16.mxu0 0
    %1349 = vmatpush1.bf16.msra.mxu0 0
    %1350 = vmatprep.subr.bf16.mxu0 0
    %1351 = vmatpush1.bf16.msra.mxu0 0
    %1352 = vmatprep.subr.bf16.mxu0 0
    %1353 = vmatpush1.bf16.msra.mxu0 0
    %1354 = vmatprep.subr.bf16.mxu0 0
    %1355 = vmatpush1.bf16.msra.mxu0 0
    %1356 = vmatprep.mubr.bf16.mxu0 0
    %1357 = vmatmul.mubr.bf16.gmra.mrb[0].mxu0 %v1319
    %v1358 = vpop.f32.mrb[0].mxu0
    %v1359 = vadd.f32 0.0, %v1358
    %v1360 = vpop.f32.mrb[0].mxu0
    %v1361 = vpop.f32.mrb[0].mxu0
    %v1362 = vpop.f32.mrb[0].mxu0
    %1363 = vdwg.mxu0
    %v1364 = vpack.c.bf16 %v1359, %v1311
    %v1366 = vsel %vm341, %v1364, 0
    %v1369 = vsel %vm466, %v325, 0
    %1371 = vmatprep.subr.bf16.mxu0 0
    %1372 = vmatpush1.bf16.msra.mxu0 %v1369
    %1373 = vmatprep.subr.bf16.mxu0 0
    %1374 = vmatpush1.bf16.msra.mxu0 0
    %1375 = vmatprep.subr.bf16.mxu0 0
    %1376 = vmatpush1.bf16.msra.mxu0 0
    %1377 = vmatprep.subr.bf16.mxu0 0
    %1378 = vmatpush1.bf16.msra.mxu0 0
    %1379 = vmatprep.subr.bf16.mxu0 0
    %1380 = vmatpush1.bf16.msra.mxu0 0
    %1381 = vmatprep.subr.bf16.mxu0 0
    %1382 = vmatpush1.bf16.msra.mxu0 0
    %1383 = vmatprep.subr.bf16.mxu0 0
    %1384 = vmatpush1.bf16.msra.mxu0 0
    %1385 = vmatprep.subr.bf16.mxu0 0
    %1386 = vmatpush1.bf16.msra.mxu0 0
    %1387 = vmatprep.subr.bf16.mxu0 0
    %1388 = vmatpush1.bf16.msra.mxu0 0
    %1389 = vmatprep.subr.bf16.mxu0 0
    %1390 = vmatpush1.bf16.msra.mxu0 0
    %1391 = vmatprep.subr.bf16.mxu0 0
    %1392 = vmatpush1.bf16.msra.mxu0 0
    %1393 = vmatprep.subr.bf16.mxu0 0
    %1394 = vmatpush1.bf16.msra.mxu0 0
    %1395 = vmatprep.subr.bf16.mxu0 0
    %1396 = vmatpush1.bf16.msra.mxu0 0
    %1397 = vmatprep.subr.bf16.mxu0 0
    %1398 = vmatpush1.bf16.msra.mxu0 0
    %1399 = vmatprep.subr.bf16.mxu0 0
    %1400 = vmatpush1.bf16.msra.mxu0 0
    %1401 = vmatprep.subr.bf16.mxu0 0
    %1402 = vmatpush1.bf16.msra.mxu0 0
    %1403 = vmatprep.mubr.bf16.mxu0 0
    %1404 = vmatmul.mubr.bf16.gmra.mrb[0].mxu0 %v1366
    %v1405 = vpop.f32.mrb[0].mxu0
    %v1406 = vadd.f32 0.0, %v1405
    %v1407 = vpop.f32.mrb[0].mxu0
    %v1408 = vpop.f32.mrb[0].mxu0
    %v1409 = vadd.f32 0.0, %v1408
    %v1410 = vpop.f32.mrb[0].mxu0
    %1411 = vdwg.mxu0
    %v1412 = vadd.f32 %v1142, %v1406
    %v1413 = vadd.f32 %v1143, %v1409
    %v1414 = vld [vmem:[#allocation13] sm:$0x1]
    %v1416 = vlaneseq
    %v1417 = vshrl.u32 %v1416, 7
    %v1418 = vsub.s32 0, %v1417
    %v1419 = vrot.slane %v1414, %v1418
    %v1421 = vadd.f32 %v1412, %v1419
    %v1422 = vadd.f32 %v1413, %v1419
    %v1423 = vadd.f32 %v206, %v1421
    %v1424 = vadd.f32 %v207, %v1422
    %v1425 = vld [vmem:[#allocation14] sm:$0x1]
    %v1426 = vld [vmem:[#allocation16] sm:$0x1]
    %v1427 = vsel %vm210, %v1423, 0.0
    %1428 = vadd.xlane.f32.xlu0 %v1427
    %v1429 = vpop.xlane.xlu0 %1428
    %v1430 = vsel %vm210, %v1424, 0.0
    %1431 = vadd.xlane.f32.xlu0 %v1430
    %v1432 = vpop.xlane.xlu0 %1431
    %v1433 = vmul.f32 %v1429, %v217
    %v1434 = vmul.f32 %v1432, %v217
    %v1435 = vsub.f32 %v1423, %v1433
    %v1436 = vsub.f32 %v1424, %v1434
    %v1437 = vmul.f32 %v1435, %v1435
    %v1438 = vmul.f32 %v1436, %v1436
    %v1439 = vsel %vm210, %v1437, 0.0
    %1440 = vadd.xlane.f32.xlu0 %v1439
    %v1441 = vpop.xlane.xlu0 %1440
    %v1442 = vsel %vm210, %v1438, 0.0
    %1443 = vadd.xlane.f32.xlu0 %v1442
    %v1444 = vpop.xlane.xlu0 %1443
    %v1445 = vmul.f32 %v1441, %v217
    %v1446 = vmul.f32 %v1444, %v217
    %v1447 = vadd.f32 %v1445, 1e-05
    %v1448 = vadd.f32 %v1446, 1e-05
    %v1449 = vrsqrt.pop %v1447
    %v1450 = vrsqrt.pop %v1448
    %v1451 = vmul.f32 %v1435, %v1449
    %v1452 = vmul.f32 %v1436, %v1450
    %v1454 = vlaneseq
    %v1455 = vshrl.u32 %v1454, 7
    %v1456 = vsub.s32 0, %v1455
    %v1457 = vrot.slane %v1425, %v1456
    %v1459 = vmul.f32 %v1451, %v1457
    %v1460 = vmul.f32 %v1452, %v1457
    %v1462 = vlaneseq
    %v1463 = vshrl.u32 %v1462, 7
    %v1464 = vsub.s32 0, %v1463
    %v1465 = vrot.slane %v1426, %v1464
    %v1467 = vadd.f32 %v1459, %v1465
    %v1468 = vadd.f32 %v1460, %v1465
    %v1469 = vpack.c.bf16 %v1468, %v1467
    %v1470 = vld [vmem:[#allocation17] sm:$0xf]
    %v1471 = vld [vmem:[#allocation17 + $0x4] sm:$0xf]
    %v1472 = vld [vmem:[#allocation17 + $0x8] sm:$0xf]
    %v1473 = vld [vmem:[#allocation17 + $0xc] sm:$0xf]
    %v1474 = vld [vmem:[#allocation19] sm:$0x1]
    %v1476 = vlaneseq
    %v1477 = vshrl.u32 %v1476, 7
    %v1478 = vsub.s32 0, %v1477
    %v1479 = vrot.slane %v1474, %v1478
    %v1485 = vunpack.c.l.b16 %v1470
    %v1486 = vunpack.c.l.b16 %v1471
    %v1487 = vunpack.c.l.b16 %v1472
    %v1488 = vunpack.c.l.b16 %v1473
    %v1489 = vpack.c.b16 %v1486, %v1485
    %v1490 = vpack.c.b16 %v1488, %v1487
    %v1494 = vsel %vm210, %v1469, 0
    %1496 = vmatprep.subr.bf16.mxu0 0
    %1497 = vmatpush1.bf16.msra.mxu0 %v1489
    %1498 = vmatprep.subr.bf16.mxu0 0
    %1499 = vmatpush1.bf16.msra.mxu0 %v1490
    %1500 = vmatprep.subr.bf16.mxu0 0
    %1501 = vmatpush1.bf16.msra.mxu0 0
    %1502 = vmatprep.subr.bf16.mxu0 0
    %1503 = vmatpush1.bf16.msra.mxu0 0
    %1504 = vmatprep.subr.bf16.mxu0 0
    %1505 = vmatpush1.bf16.msra.mxu0 0
    %1506 = vmatprep.subr.bf16.mxu0 0
    %1507 = vmatpush1.bf16.msra.mxu0 0
    %1508 = vmatprep.subr.bf16.mxu0 0
    %1509 = vmatpush1.bf16.msra.mxu0 0
    %1510 = vmatprep.subr.bf16.mxu0 0
    %1511 = vmatpush1.bf16.msra.mxu0 0
    %1512 = vmatprep.subr.bf16.mxu0 0
    %1513 = vmatpush1.bf16.msra.mxu0 0
    %1514 = vmatprep.subr.bf16.mxu0 0
    %1515 = vmatpush1.bf16.msra.mxu0 0
    %1516 = vmatprep.subr.bf16.mxu0 0
    %1517 = vmatpush1.bf16.msra.mxu0 0
    %1518 = vmatprep.subr.bf16.mxu0 0
    %1519 = vmatpush1.bf16.msra.mxu0 0
    %1520 = vmatprep.subr.bf16.mxu0 0
    %1521 = vmatpush1.bf16.msra.mxu0 0
    %1522 = vmatprep.subr.bf16.mxu0 0
    %1523 = vmatpush1.bf16.msra.mxu0 0
    %1524 = vmatprep.subr.bf16.mxu0 0
    %1525 = vmatpush1.bf16.msra.mxu0 0
    %1526 = vmatprep.subr.bf16.mxu0 0
    %1527 = vmatpush1.bf16.msra.mxu0 0
    %1528 = vmatprep.mubr.bf16.mxu0 0
    %1529 = vmatmul.mubr.bf16.gmra.mrb[0].mxu0 %v1494
    %v1530 = vpop.f32.mrb[0].mxu0
    %v1531 = vadd.f32 %v1479, %v1530
    %v1532 = vpop.f32.mrb[0].mxu0
    %v1533 = vpop.f32.mrb[0].mxu0
    %v1534 = vadd.f32 %v1479, %v1533
    %v1535 = vpop.f32.mrb[0].mxu0
    %1536 = vdwg.mxu0
    %v1537 = vmul.f32 %v1531, -1.702
    %v1538 = vmul.f32 %v1534, -1.702
    %v1539 = vmul.f32 %v1537, 1.442695
    %v1540 = vpow.pop %v1539
    %v1541 = vmul.f32 %v1538, 1.442695
    %v1542 = vpow.pop %v1541
    %v1543 = vadd.f32 %v1540, 1.0
    %v1544 = vadd.f32 %v1542, 1.0
    %v1545 = vrcp.pop %v1543
    %v1546 = vmul.f32 1.0, %v1545
    %v1547 = vrcp.pop %v1544
    %v1548 = vmul.f32 1.0, %v1547
    %v1549 = vmul.f32 %v1531, %v1546
    %v1550 = vmul.f32 %v1534, %v1548
    %v1551 = vpack.c.bf16 %v1550, %v1549
    %v1552 = vld [vmem:[#allocation20] sm:$0xf]
    %v1553 = vld [vmem:[#allocation20 + $0x4] sm:$0xf]
    %v1554 = vld [vmem:[#allocation20 + $0x8] sm:$0xf]
    %v1555 = vld [vmem:[#allocation20 + $0xc] sm:$0xf]
    %v1556 = vld [vmem:[#allocation20 + $0x10] sm:$0xf]
    %v1557 = vld [vmem:[#allocation20 + $0x14] sm:$0xf]
    %v1558 = vld [vmem:[#allocation20 + $0x18] sm:$0xf]
    %v1559 = vld [vmem:[#allocation20 + $0x1c] sm:$0xf]
    %v1560 = vld [vmem:[#allocation20 + $0x20] sm:$0xf]
    %v1561 = vld [vmem:[#allocation20 + $0x24] sm:$0xf]
    %v1562 = vld [vmem:[#allocation20 + $0x28] sm:$0xf]
    %v1563 = vld [vmem:[#allocation20 + $0x2c] sm:$0xf]
    %v1564 = vld [vmem:[#allocation20 + $0x30] sm:$0xf]
    %v1565 = vld [vmem:[#allocation20 + $0x34] sm:$0xf]
    %v1566 = vld [vmem:[#allocation20 + $0x38] sm:$0xf]
    %v1567 = vld [vmem:[#allocation20 + $0x3c] sm:$0xf]
    %v1568 = vld [vmem:[#allocation22] sm:$0x1]
    %v1570 = vlaneseq
    %v1571 = vshrl.u32 %v1570, 7
    %v1572 = vsub.s32 0, %v1571
    %v1573 = vrot.slane %v1568, %v1572
    %v1591 = vunpack.c.l.b16 %v1552
    %v1592 = vunpack.c.l.b16 %v1553
    %v1593 = vunpack.c.l.b16 %v1554
    %v1594 = vunpack.c.l.b16 %v1555
    %v1595 = vunpack.c.l.b16 %v1556
    %v1596 = vunpack.c.l.b16 %v1557
    %v1597 = vunpack.c.l.b16 %v1558
    %v1598 = vunpack.c.l.b16 %v1559
    %v1599 = vunpack.c.l.b16 %v1560
    %v1600 = vunpack.c.l.b16 %v1561
    %v1601 = vunpack.c.l.b16 %v1562
    %v1602 = vunpack.c.l.b16 %v1563
    %v1603 = vunpack.c.l.b16 %v1564
    %v1604 = vunpack.c.l.b16 %v1565
    %v1605 = vunpack.c.l.b16 %v1566
    %v1606 = vunpack.c.l.b16 %v1567
    %v1607 = vpack.c.b16 %v1592, %v1591
    %v1608 = vpack.c.b16 %v1594, %v1593
    %v1609 = vpack.c.b16 %v1596, %v1595
    %v1610 = vpack.c.b16 %v1598, %v1597
    %v1611 = vpack.c.b16 %v1600, %v1599
    %v1612 = vpack.c.b16 %v1602, %v1601
    %v1613 = vpack.c.b16 %v1604, %v1603
    %v1614 = vpack.c.b16 %v1606, %v1605
    %1623 = vmatprep.subr.bf16.mxu0 0
    %1624 = vmatpush1.bf16.msra.mxu0 %v1607
    %1625 = vmatprep.subr.bf16.mxu0 0
    %1626 = vmatpush1.bf16.msra.mxu0 %v1608
    %1627 = vmatprep.subr.bf16.mxu0 0
    %1628 = vmatpush1.bf16.msra.mxu0 %v1609
    %1629 = vmatprep.subr.bf16.mxu0 0
    %1630 = vmatpush1.bf16.msra.mxu0 %v1610
    %1631 = vmatprep.subr.bf16.mxu0 0
    %1632 = vmatpush1.bf16.msra.mxu0 %v1611
    %1633 = vmatprep.subr.bf16.mxu0 0
    %1634 = vmatpush1.bf16.msra.mxu0 %v1612
    %1635 = vmatprep.subr.bf16.mxu0 0
    %1636 = vmatpush1.bf16.msra.mxu0 %v1613
    %1637 = vmatprep.subr.bf16.mxu0 0
    %1638 = vmatpush1.bf16.msra.mxu0 %v1614
    %1639 = vmatprep.subr.bf16.mxu0 0
    %1640 = vmatpush1.bf16.msra.mxu0 0
    %1641 = vmatprep.subr.bf16.mxu0 0
    %1642 = vmatpush1.bf16.msra.mxu0 0
    %1643 = vmatprep.subr.bf16.mxu0 0
    %1644 = vmatpush1.bf16.msra.mxu0 0
    %1645 = vmatprep.subr.bf16.mxu0 0
    %1646 = vmatpush1.bf16.msra.mxu0 0
    %1647 = vmatprep.subr.bf16.mxu0 0
    %1648 = vmatpush1.bf16.msra.mxu0 0
    %1649 = vmatprep.subr.bf16.mxu0 0
    %1650 = vmatpush1.bf16.msra.mxu0 0
    %1651 = vmatprep.subr.bf16.mxu0 0
    %1652 = vmatpush1.bf16.msra.mxu0 0
    %1653 = vmatprep.subr.bf16.mxu0 0
    %1654 = vmatpush1.bf16.msra.mxu0 0
    %1655 = vmatprep.mubr.bf16.mxu0 0
    %1656 = vmatmul.mubr.bf16.gmra.mrb[0].mxu0 %v1551
    %v1657 = vpop.f32.mrb[0].mxu0
    %v1658 = vadd.f32 %v1573, %v1657
    %v1659 = vpop.f32.mrb[0].mxu0
    %v1660 = vpop.f32.mrb[0].mxu0
    %v1661 = vadd.f32 %v1573, %v1660
    %v1662 = vpop.f32.mrb[0].mxu0
    %1663 = vdwg.mxu0
    %v1664 = vadd.f32 %v1423, %v1658
    %v1665 = vadd.f32 %v1424, %v1661
    %1666 = vst.msk [vmem:[#allocation23] sm:$0xff] %vm210, %v1664
    %1667 = vst.msk [vmem:[#allocation23 + $0x8] sm:$0xff] %vm210, %v1665
    // Predicated region
    $region106: #{tpu_custom_call.1} parent=1 // pred_check
      _
    $region107: #{tpu_custom_call.1} parent=1 // pred_check_branch
      %1669 = sbr.rel (0) target = $region109
    $region108: #{tpu_custom_call.1} parent=1 // pred_region
      %s1671 = ssub.s32 256, 256
      %1672 = vsyncadd [#allocation4], %s1671
      %s1673 = sshll.u32 [#allocation23], 4
      %s1674 = int_to_ptr.vmem [resolvable:$true] %s1673
      %1679 = dma.vmem_to_hbm [thread:$0]  %s1674, 256, %s13, [#allocation4], 128, 128, 8
    $region109: #{tpu_custom_call.1} parent=1 // pred_fallthru
      _
    // Predicated region
    $region110: #{tpu_custom_call.1} parent=1 // pred_check
      _
    $region111: #{tpu_custom_call.1} parent=1 // pred_check_branch
      %1681 = sbr.rel (0) target = $region113
    $region112: #{tpu_custom_call.1} parent=1 // pred_region
      %1682 = dma.done [#allocation4], 256
    $region113: #{tpu_custom_call.1} parent=1 // pred_fallthru
      _
    %1683 = vsyncpa [#allocation3], 1
    %1684 = vsyncpa [#allocation6], 1
    %1685 = vsyncpa [#allocation9], 1
    %1686 = vsyncpa [#allocation12], 1
    %1687 = vsyncpa [#allocation15], 1
    %1688 = vsyncpa [#allocation18], 1
    %1689 = vsyncpa [#allocation21], 1
    %1690 = vsyncpa [#allocation4], 1

</llo_original>
